<compile_context>
chip_gen: v7x
topology: tpu7x:2x2x1
jax: 0.10.0
libtpu: 0.0.40
codegen_flags: <defaults>
</compile_context>

<pallas_src>
import numpy as np
import jax
import jax.numpy as jnp
from jax import lax
from jax.experimental import pallas as pl
from jax.experimental.pallas import tpu as pltpu

# ----------------------------------------------------------------------------------
# Module hyper-parameters (mirrors APNet_mod.__init__ defaults, mode='Behler')
# ----------------------------------------------------------------------------------
N_RADIAL = 43
N_AP = 21
CUTOFF_RADIUS = 8.0
SYM_START = 0.8
SYM_CUT = 5.5
WIDTH_ADJUST = 0.5 ** 0.5
WIDTH_ADJUST_AP = 2.0 ** 0.5
ELEMENTS = (1, 6, 7, 8, 9)          # iteration order of frozenset of small ints == sorted
N_ELEMENTS = len(ELEMENTS)          # 'onehot' init -> n_elements = 5
MAX_Z = max(ELEMENTS)

# reaction-coordinate (FermiDirac) configuration — must be provided for this forward path
ATOM_T = 1
ATOM_REACT = [0, 2]
ATOM_PROD = [5, 6]
CUTOFF_REACT = 2.0
CUTOFF_PROD = 2.5
MORSE_BETA = 10.0


def _gaussian_params(start, stop, n, width_adjust):
    offsets = np.linspace(start, stop, n).astype(np.float64)
    step = float(offsets[1] - offsets[0])
    width = float(width_adjust) * step
    coeff = -0.5 / (width * width)
    return float(offsets[0]), step, float(coeff)


RAD_START, RAD_STEP, RAD_COEFF = _gaussian_params(SYM_START, SYM_CUT - 0.5, N_RADIAL, WIDTH_ADJUST)
AP_START, AP_STEP, AP_COEFF = _gaussian_params(-1.0, 1.0, N_AP, WIDTH_ADJUST_AP)

# one-hot elemental embedding (initz('onehot', elements)), deterministic, non-trainable
Z_WEIGHTS = np.zeros((MAX_Z + 1, N_ELEMENTS), dtype=np.float32)
for _idx, _z in enumerate(ELEMENTS):
    Z_WEIGHTS[_z, _idx] = 1.0


def _pick_exp_dtype():
    """bf16 EUP (2x transcendental throughput) exists on v6e/v7x only."""
    try:
        kind = jax.devices()[0].device_kind.lower()
    except Exception:
        return jnp.float32
    if ("v6" in kind) or ("v7" in kind) or ("7x" in kind):
        return jnp.bfloat16
    return jnp.float32


EXP_DTYPE = _pick_exp_dtype()


def _round_up(x, m):
    return ((x + m - 1) // m) * m


# ----------------------------------------------------------------------------------
# In-kernel helpers
# ----------------------------------------------------------------------------------
def _cosine_cutoff(d):
    c = 0.5 * (jnp.cos(d * (np.pi / CUTOFF_RADIUS)) + 1.0)
    return c * (d < CUTOFF_RADIUS).astype(jnp.float32)


def _smear_reduce(d, w, fc, start, step, coeff, n_g, k_on_lanes):
    """Gaussian-smear `d`, apply cutoff `fc`, reduce with one-hot element weights `w`.

    d  : (TA, K) f32 values to smear (neighbor distances or cos(theta))
    w  : (TA, E, K) bf16 one-hot weights with the validity mask folded in
    fc : (TA, K) f32 cutoff factor
    returns (TA, E, n_g) f32 via a batched bf16 MXU matmul with f32 accumulation.

    k_on_lanes=True keeps the reduced axis K on the 128-lane axis (dense when K >= n_g);
    False puts the n_g Gaussians on lanes instead (dense when K < n_g).  Both einsum
    forms are batch-leading (MXU-friendly, no relayout of the big intermediate).
    """
    f32 = jnp.float32
    bf16 = jnp.bfloat16
    if k_on_lanes:
        off = start + step * lax.broadcasted_iota(jnp.int32, (1, n_g, 1), 1).astype(f32)
        diff = d[:, None, :] - off                                    # (TA, G, K)
        gauss = jnp.exp((coeff * (diff * diff)).astype(EXP_DTYPE))
        f = gauss.astype(bf16) * fc[:, None, :].astype(bf16)
        return jnp.einsum('aek,agk->aeg', w, f, preferred_element_type=f32)
    else:
        off = start + step * lax.broadcasted_iota(jnp.int32, (1, 1, n_g), 2).astype(f32)
        diff = d[:, :, None] - off                                    # (TA, K, G)
        gauss = jnp.exp((coeff * (diff * diff)).astype(EXP_DTYPE))
        f = gauss.astype(bf16) * fc[:, :, None].astype(bf16)
        return jnp.einsum('aek,akg->aeg', w, f, preferred_element_type=f32)


def _make_kernel(rad_k_on_lanes, ang_k_on_lanes):
    """Grid: (batch, atom tile, triple tile).  Triple axis is a reduction axis."""

    def kernel(r_ref, zij_ref, rij_ref, rik_ref, rjk_ref, zik_ref,
               rad_ref, ap_ref, inv_ref, acc_ref):
        kt = pl.program_id(2)

        # ---- radial symmetry functions + inverse distances: depend only on (b, a),
        #      so run them once, on the first triple step (blocks stay resident).
        @pl.when(kt == 0)
        def _radial_and_init():
            r_m = r_ref[0]                      # (TA, N) masked neighbor distances
            zij = zij_ref[0]                    # (TA, E, N) bf16 one-hot(Z_j) * mask
            rad_ref[0] = _smear_reduce(r_m, zij, _cosine_cutoff(r_m),
                                       RAD_START, RAD_STEP, RAD_COEFF, N_RADIAL,
                                       rad_k_on_lanes)
            # masked slots hold distance 0 -> inf here, matching torch's 1/0
            inv_ref[0] = pl.reciprocal(r_m, approx=False)
            acc_ref[...] = jnp.zeros_like(acc_ref)

        # ---- atom-pair / angular symmetry functions, accumulated over triple tiles.
        # TODO(synk): APDistribution_Mod source not provided; implemented with standard
        # angular-distribution semantics (Gaussian smearing of cos(theta_jik) on [-1,1],
        # cosine cutoffs on r_ij & r_ik, triple mask, Z_ik element weighting).
        rij = rij_ref[0]                        # (TA, TK)
        rik = rik_ref[0]
        rjk = rjk_ref[0]
        zik = zik_ref[0]                        # (TA, E, TK) bf16 one-hot(Z_k) * mask
        denom = 2.0 * rij * rik
        denom = jnp.where(denom > 1e-12, denom, 1.0)
        cos_t = (rij * rij + rik * rik - rjk * rjk) / denom
        fc = _cosine_cutoff(rij) * _cosine_cutoff(rik)
        acc_ref[...] += _smear_reduce(cos_t, zik, fc,
                                      AP_START, AP_STEP, AP_COEFF, N_AP,
                                      ang_k_on_lanes)

        @pl.when(kt == pl.num_programs(2) - 1)
        def _finalize():
            ap_ref[0] = acc_ref[...]

    return kernel


# ----------------------------------------------------------------------------------
# Tile selection from a per-step VMEM budget (works for v5e / v6e / v7x)
# ----------------------------------------------------------------------------------
_VMEM_STEP_BUDGET = 20 * 1024 * 1024


def _select_tiles(B, A, N, T):
    N_l = _round_up(max(N, 1), 128)
    G_s = _round_up(N_RADIAL, 8)
    P_s = _round_up(N_AP, 8)

    def est(TA, TK):
        TK_l = _round_up(max(TK, 1), 128)
        inp = 2 * (TA * N_l * 4               # r
                   + TA * 16 * N_l * 2        # zij  (E=5 -> 16 bf16 sublanes)
                   + 3 * TA * TK_l * 4        # rij / rik / rjk
                   + TA * 16 * TK_l * 2)      # zik
        out = 2 * (2 * TA * 8 * 128 * 4 + TA * N_l * 4)
        scr = TA * 8 * 128 * 4
        ang = TA * TK_l * (4 * 4 + P_s * (4 + 4 + 2))   # cos/fc temps + Gaussian temps
        rad = TA * N_l * (4 * 4 + G_s * (4 + 4 + 2))
        return inp + out + scr + max(ang, rad)

    ta_cands = [t for t in (128, 64, 32, 16, 8) if t <= _round_up(A, 8)] or [8]
    tk_cands = (4096, 2048, 1024, 512, 256, 128)

    best = None
    for TA in ta_cands:
        if est(TA, T) <= _VMEM_STEP_BUDGET:          # whole triple axis in one step
            TK = max(T, 1)
        else:
            TK = None
            for tk in tk_cands:
                if tk < T and est(TA, tk) <= _VMEM_STEP_BUDGET:
                    TK = tk
                    break
            if TK is None:
                continue
        waste = _round_up(A, TA) - A                 # padded atoms = wasted work
        key = (waste, -TA)
        if best is None or key < best[0]:
            best = (key, TA, TK)

    if best is None:
        TA_sel, TK_sel = 8, min(max(T, 1), 128)
    else:
        TA_sel, TK_sel = best[1], best[2]

    # v7x has two TensorCores sharded over the 'parallel' axes: keep >= 2 grid steps.
    while B * (-(-A // TA_sel)) < 2 and TA_sel > 8:
        TA_sel //= 2
    return TA_sel, TK_sel


def _vmem_limit_bytes():
    try:
        cap = int(pltpu.get_tpu_info().vmem_capacity_bytes)
        return max(32 * 1024 * 1024, min(cap * 3 // 4, 96 * 1024 * 1024))
    except Exception:
        return 40 * 1024 * 1024


# ----------------------------------------------------------------------------------
# Wrapper: gathers (glue) + pallas_call + output reshapes / FermiDirac gate (glue)
# ----------------------------------------------------------------------------------
def apnet_forward(positions, Z, neighbors, neighbor_mask, idx_j, idx_k, neighbor_pairs_mask):
    f32 = jnp.float32
    bf16 = jnp.bfloat16
    B, A, _ = positions.shape
    N = neighbors.shape[2]
    T = idx_j.shape[2]
    E = N_ELEMENTS

    nbr_mask = neighbor_mask.astype(f32)
    trip_mask = neighbor_pairs_mask.astype(f32)
    bidx = jnp.arange(B)[:, None, None]
    aidx = jnp.arange(A)[None, :, None]

    # Full pairwise distance matrix once: every distance the module needs (neighbor
    # distances, r_ij, r_ik, r_jk) is a cheap scalar gather instead of (B,A,T,3)
    # position gathers + norms.
    # TODO(synk): non-periodic systems only (cell / cell_offset / neighbor offsets
    # assumed zero, as in the reference usage).
    dvec = positions[:, :, None, :] - positions[:, None, :, :]
    D = jnp.sqrt(jnp.sum(dvec * dvec, axis=-1)).astype(f32)          # (B, A, A)

    r = D[bidx, aidx, neighbors]                                     # (B, A, N)
    r_m = jnp.where(nbr_mask != 0, r, 0.0)                           # masked -> 0 (torch)
    rij = D[bidx, aidx, idx_j]                                       # (B, A, T)
    rik = D[bidx, aidx, idx_k]
    rjk = D[bidx, idx_j, idx_k]

    # one-hot elemental embeddings; neighbor/triple masks folded in so masked slots
    # contribute exactly zero inside the kernel regardless of cutoff values
    z_onehot = jnp.asarray(Z_WEIGHTS)[Z]                             # (B, A, E)
    zij = (z_onehot[bidx, neighbors] * nbr_mask[..., None]
           ).transpose(0, 1, 3, 2).astype(bf16)                      # (B, A, E, N)
    zik = (z_onehot[bidx, idx_k] * trip_mask[..., None]
           ).transpose(0, 1, 3, 2).astype(bf16)                      # (B, A, E, T)

    # ---- tiling: atoms (parallel) x triples (reduction), from a VMEM budget ----
    TA, TK = _select_tiles(B, A, N, T)
    A_pad = _round_up(A, TA)
    T_eff = max(T, 1)
    T_pad = T_eff if TK == T_eff else _round_up(T_eff, TK)
    pa, pt = A_pad - A, T_pad - T

    def _pad(x, a_axis, t_axis=None):
        widths = [(0, 0)] * x.ndim
        if pa:
            widths[a_axis] = (0, pa)
        if t_axis is not None and pt:
            widths[t_axis] = (0, pt)
        if not any(w != (0, 0) for w in widths):
            return x
        return jnp.pad(x, widths)      # zero padding contributes nothing (weights = 0)

    r_p = _pad(r_m, 1)
    zij_p = _pad(zij, 1)
    rij_p = _pad(rij, 1, 2)
    rik_p = _pad(rik, 1, 2)
    rjk_p = _pad(rjk, 1, 2)
    zik_p = _pad(zik, 1, 3)

    grid = (B, A_pad // TA, T_pad // TK)

    # dense layout choice per the review: reduced axis on lanes when it is the wide one
    rad_k_on_lanes = N >= N_RADIAL
    ang_k_on_lanes = T_pad >= N_AP
    kernel = _make_kernel(rad_k_on_lanes, ang_k_on_lanes)

    out_shapes = (
        jax.ShapeDtypeStruct((B, A_pad, E, N_RADIAL), f32),   # radial sf (E, G) per atom
        jax.ShapeDtypeStruct((B, A_pad, E, N_AP), f32),       # ap sf (E, P) per atom
        jax.ShapeDtypeStruct((B, A_pad, N), f32),             # inverse pair distances
    )
    in_specs = [
        pl.BlockSpec((1, TA, N), lambda b, a, k: (b, a, 0)),           # r (masked)
        pl.BlockSpec((1, TA, E, N), lambda b, a, k: (b, a, 0, 0)),     # Z_ij * mask (bf16)
        pl.BlockSpec((1, TA, TK), lambda b, a, k: (b, a, k)),          # r_ij
        pl.BlockSpec((1, TA, TK), lambda b, a, k: (b, a, k)),          # r_ik
        pl.BlockSpec((1, TA, TK), lambda b, a, k: (b, a, k)),          # r_jk
        pl.BlockSpec((1, TA, E, TK), lambda b, a, k: (b, a, 0, k)),    # Z_ik * mask (bf16)
    ]
    out_specs = (
        pl.BlockSpec((1, TA, E, N_RADIAL), lambda b, a, k: (b, a, 0, 0)),
        pl.BlockSpec((1, TA, E, N_AP), lambda b, a, k: (b, a, 0, 0)),
        pl.BlockSpec((1, TA, N), lambda b, a, k: (b, a, 0)),
    )

    rad, ap, inv = pl.pallas_call(
        kernel,
        out_shape=out_shapes,
        grid=grid,
        in_specs=in_specs,
        out_specs=out_specs,
        scratch_shapes=[pltpu.VMEM((TA, E, N_AP), jnp.float32)],       # AP accumulator
        compiler_params=pltpu.CompilerParams(
            dimension_semantics=("parallel", "parallel", "arbitrary"),
            vmem_limit_bytes=_vmem_limit_bytes()),
    )(r_p, zij_p, rij_p, rik_p, rjk_p, zik_p)

    # drop padded atoms
    rad = rad[:, :A]
    ap = ap[:, :A]
    inv = inv[:, :A]

    # glue reshapes: (B, A, E, G) -> (B, A, G*E), matching torch's (g*E + e) flatten order
    radial_sf = jnp.transpose(rad, (0, 1, 3, 2)).reshape(B, A, N_RADIAL * E)
    ap_sf = jnp.transpose(ap, (0, 1, 3, 2)).reshape(B, A, N_AP * E)

    pair_flat = r_m.reshape(B, A * N)
    inv_flat = inv.reshape(B, A * N)       # inf at masked slots, like torch 1/0
    dists = jnp.stack([pair_flat, inv_flat], axis=-1)

    # --- Fermi-Dirac reaction/product gating: <=4 selected scalars, done in the wrapper ---
    # (Indexes the masked flattened pair_dist exactly as the torch module does.)
    atom_t_ind = ATOM_T * (A - 1)
    react_idx = np.asarray(
        [atom_t_ind + (a - 1 if a > ATOM_T else a) for a in ATOM_REACT], np.int32)
    prod_idx = np.asarray(
        [atom_t_ind + (a - 1 if a > ATOM_T else a) for a in ATOM_PROD], np.int32)
    if int(react_idx.max()) >= A * N or int(prod_idx.max()) >= A * N:
        raise ValueError("reaction-coordinate atom indices out of range for this system")
    react_d = jnp.min(pair_flat[:, react_idx], axis=1, keepdims=True)
    prod_d = jnp.min(pair_flat[:, prod_idx], axis=1, keepdims=True)
    # TODO(synk): FermiDirac source not provided; using f(d) = 1/(exp(beta*(d-mu))+1).
    fd_react = 1.0 / (jnp.exp(MORSE_BETA * (react_d - CUTOFF_REACT)) + 1.0)
    fd_prod = 1.0 / (jnp.exp(MORSE_BETA * (prod_d - CUTOFF_PROD)) + 1.0)
    fd = fd_react * fd_prod                                          # (B, 1)

    return radial_sf, ap_sf, dists, fd


# ----------------------------------------------------------------------------------
if __name__ == "__main__":
    B, A = 2, 8
    N = A - 1                      # all-pairs neighbor list
    key = jax.random.PRNGKey(0)
    k_pos, k_z = jax.random.split(key)

    positions = jax.random.uniform(k_pos, (B, A, 3), minval=-3.0, maxval=3.0,
                                   dtype=jnp.float32)
    zidx = jax.random.randint(k_z, (B, A), 0, N_ELEMENTS)
    Z = jnp.asarray(np.array(ELEMENTS, dtype=np.int32))[zidx]        # atomic numbers

    # all-pairs neighbor list: neighbors of atom i = all j != i (in order)
    nbh = np.stack([np.concatenate([np.arange(0, i), np.arange(i + 1, A)])
                    for i in range(A)]).astype(np.int32)             # (A, N)
    neighbors = jnp.broadcast_to(jnp.asarray(nbh)[None], (B, A, N))
    neighbor_mask = jnp.ones((B, A, N), dtype=jnp.float32)

    # triples: all (j, k) combinations of the neighbor list (collect_atom_triples)
    jj, kk = np.triu_indices(N, k=1)
    T = jj.shape[0]
    idx_j = jnp.broadcast_to(jnp.asarray(nbh[:, jj])[None], (B, A, T))
    idx_k = jnp.broadcast_to(jnp.asarray(nbh[:, kk])[None], (B, A, T))
    neighbor_pairs_mask = jnp.ones((B, A, T), dtype=jnp.float32)

    outputs = apnet_forward(positions, Z, neighbors, neighbor_mask,
                            idx_j, idx_k, neighbor_pairs_mask)
    jax.block_until_ready(outputs)

    radial_sf, ap_sf, dists, fd = outputs
    assert radial_sf.shape == (B, A, N_RADIAL * N_ELEMENTS)
    assert ap_sf.shape == (B, A, N_AP * N_ELEMENTS)
    assert dists.shape == (B, A * N, 2)
    assert fd.shape == (B, 1)
    print("KERNEL_OK")
</pallas_src>

<mosaic_0001>
module attributes {stable_mosaic.version = 11 : i64} {
  func.func @kernel(%arg0: i32, %arg1: i32, %arg2: i32, %arg3: memref<1x8x7xf32, #tpu.memory_space<vmem>>, %arg4: memref<1x8x5x7xbf16, #tpu.memory_space<vmem>>, %arg5: memref<1x8x21xf32, #tpu.memory_space<vmem>>, %arg6: memref<1x8x21xf32, #tpu.memory_space<vmem>>, %arg7: memref<1x8x21xf32, #tpu.memory_space<vmem>>, %arg8: memref<1x8x5x21xbf16, #tpu.memory_space<vmem>>, %arg9: memref<1x8x5x43xf32, #tpu.memory_space<vmem>>, %arg10: memref<1x8x5x21xf32, #tpu.memory_space<vmem>>, %arg11: memref<1x8x7xf32, #tpu.memory_space<vmem>>, %arg12: memref<8x5x21xf32, #tpu.memory_space<vmem>>) attributes {dimension_semantics = [#tpu.dimension_semantics<parallel>, #tpu.dimension_semantics<parallel>, #tpu.dimension_semantics<arbitrary>], iteration_bounds = array<i64: 2, 1, 1>, scalar_prefetch = 0 : i64, scratch_operands = 1 : i64, tpu.core_type = #tpu.core_type<tc>, window_params = [{transform_indices = @transform_0, window_bounds = array<i64: 1, 8, 7>}, {transform_indices = @transform_1, window_bounds = array<i64: 1, 8, 5, 7>}, {transform_indices = @transform_2, window_bounds = array<i64: 1, 8, 21>}, {transform_indices = @transform_3, window_bounds = array<i64: 1, 8, 21>}, {transform_indices = @transform_4, window_bounds = array<i64: 1, 8, 21>}, {transform_indices = @transform_5, window_bounds = array<i64: 1, 8, 5, 21>}, {transform_indices = @transform_6, window_bounds = array<i64: 1, 8, 5, 43>}, {transform_indices = @transform_7, window_bounds = array<i64: 1, 8, 5, 21>}, {transform_indices = @transform_8, window_bounds = array<i64: 1, 8, 7>}]} {
    %c0_i32 = arith.constant 0 : i32
    %0 = arith.cmpi eq, %arg2, %c0_i32 : i32
    %1 = arith.extui %0 : i1 to i32
    %c0_i32_0 = arith.constant 0 : i32
    %2 = arith.cmpi ne, %1, %c0_i32_0 : i32
    scf.if %2 {
      %c0_35 = arith.constant 0 : index
      %c0_36 = arith.constant 0 : index
      %c0_37 = arith.constant 0 : index
      %75 = vector.load %arg3[%c0_35, %c0_36, %c0_37] : memref<1x8x7xf32, #tpu.memory_space<vmem>>, vector<1x8x7xf32>
      %76 = vector.shape_cast %75 : vector<1x8x7xf32> to vector<8x7xf32>
      %c0_38 = arith.constant 0 : index
      %c0_39 = arith.constant 0 : index
      %c0_40 = arith.constant 0 : index
      %c0_41 = arith.constant 0 : index
      %77 = vector.load %arg4[%c0_38, %c0_39, %c0_40, %c0_41] : memref<1x8x5x7xbf16, #tpu.memory_space<vmem>>, vector<1x8x5x7xbf16>
      %78 = vector.shape_cast %77 : vector<1x8x5x7xbf16> to vector<8x5x7xbf16>
      %cst_42 = arith.constant 0.392699093 : f32
      %79 = vector.broadcast %cst_42 : f32 to vector<8x7xf32>
      %80 = arith.mulf %76, %79 : vector<8x7xf32>
      %81 = math.cos %80 : vector<8x7xf32>
      %cst_43 = arith.constant 1.000000e+00 : f32
      %82 = vector.broadcast %cst_43 : f32 to vector<8x7xf32>
      %83 = arith.addf %81, %82 : vector<8x7xf32>
      %cst_44 = arith.constant 5.000000e-01 : f32
      %84 = vector.broadcast %cst_44 : f32 to vector<8x7xf32>
      %85 = arith.mulf %84, %83 : vector<8x7xf32>
      %cst_45 = arith.constant 8.000000e+00 : f32
      %86 = vector.broadcast %cst_45 : f32 to vector<8x7xf32>
      %87 = arith.cmpf olt, %76, %86 : vector<8x7xf32>
      %88 = arith.extui %87 : vector<8x7xi1> to vector<8x7xi32>
      %89 = arith.sitofp %88 : vector<8x7xi32> to vector<8x7xf32>
      %90 = arith.mulf %85, %89 : vector<8x7xf32>
      %91 = tpu.iota {dimensions = array<i32: 2>} : vector<1x1x43xi32>
      %92 = arith.sitofp %91 : vector<1x1x43xi32> to vector<1x1x43xf32>
      %cst_46 = arith.constant 1.000000e-01 : f32
      %93 = vector.broadcast %cst_46 : f32 to vector<1x1x43xf32>
      %94 = arith.mulf %93, %92 : vector<1x1x43xf32>
      %cst_47 = arith.constant 8.000000e-01 : f32
      %95 = vector.broadcast %cst_47 : f32 to vector<1x1x43xf32>
      %96 = arith.addf %95, %94 : vector<1x1x43xf32>
      %97 = vector.shape_cast %76 : vector<8x7xf32> to vector<8x7x1xf32>
      %98 = vector.broadcast %97 : vector<8x7x1xf32> to vector<8x7x43xf32>
      %99 = vector.broadcast %96 : vector<1x1x43xf32> to vector<8x7x43xf32>
      %100 = arith.subf %98, %99 : vector<8x7x43xf32>
      %101 = arith.mulf %100, %100 : vector<8x7x43xf32>
      %cst_48 = arith.constant -1.000000e+02 : f32
      %102 = vector.broadcast %cst_48 : f32 to vector<8x7x43xf32>
      %103 = arith.mulf %102, %101 : vector<8x7x43xf32>
      %104 = math.exp %103 : vector<8x7x43xf32>
      %105 = arith.truncf %104 : vector<8x7x43xf32> to vector<8x7x43xbf16>
      %106 = vector.shape_cast %90 : vector<8x7xf32> to vector<8x7x1xf32>
      %107 = arith.truncf %106 : vector<8x7x1xf32> to vector<8x7x1xbf16>
      %108 = vector.broadcast %107 : vector<8x7x1xbf16> to vector<8x7x43xbf16>
      %109 = arith.mulf %105, %108 : vector<8x7x43xbf16>
      "tpu.trace_start"() <{level = 10 : i32, message = "aek,akg->aeg"}> : () -> ()
      %cst_49 = arith.constant dense<0.000000e+00> : vector<8x5x43xf32>
      %110 = tpu.matmul %78, %109, %cst_49 {dimension_numbers = #tpu.dot_dimension_numbers<[2], [1], [1], [2], [0, 0, 0, 1, 1, 2], [0], [0]>} : vector<8x5x7xbf16>, vector<8x7x43xbf16>, vector<8x5x43xf32> -> vector<8x5x43xf32>
      "tpu.trace_stop"() : () -> ()
      %c0_50 = arith.constant 0 : index
      %c0_51 = arith.constant 0 : index
      %c0_52 = arith.constant 0 : index
      %c0_53 = arith.constant 0 : index
      %111 = vector.load %arg9[%c0_50, %c0_51, %c0_52, %c0_53] : memref<1x8x5x43xf32, #tpu.memory_space<vmem>>, vector<1x8x5x43xf32>
      %112 = vector.shape_cast %111 : vector<1x8x5x43xf32> to vector<8x5x43xf32>
      %113 = vector.shape_cast %110 : vector<8x5x43xf32> to vector<1x8x5x43xf32>
      tpu.vector_store %arg9[%c0_50, %c0_51, %c0_52, %c0_53], %113 {strides = array<i32>} : memref<1x8x5x43xf32, #tpu.memory_space<vmem>>, vector<1x8x5x43xf32>,
      %114 = tpu.reciprocal %76 : vector<8x7xf32> -> vector<8x7xf32>
      %c0_54 = arith.constant 0 : index
      %c0_55 = arith.constant 0 : index
      %c0_56 = arith.constant 0 : index
      %115 = vector.load %arg11[%c0_54, %c0_55, %c0_56] : memref<1x8x7xf32, #tpu.memory_space<vmem>>, vector<1x8x7xf32>
      %116 = vector.shape_cast %115 : vector<1x8x7xf32> to vector<8x7xf32>
      %117 = vector.shape_cast %114 : vector<8x7xf32> to vector<1x8x7xf32>
      tpu.vector_store %arg11[%c0_54, %c0_55, %c0_56], %117 {strides = array<i32>} : memref<1x8x7xf32, #tpu.memory_space<vmem>>, vector<1x8x7xf32>,
      %cst_57 = arith.constant 0.000000e+00 : f32
      %118 = vector.broadcast %cst_57 : f32 to vector<8x5x21xf32>
      %c0_58 = arith.constant 0 : index
      %c0_59 = arith.constant 0 : index
      %c0_60 = arith.constant 0 : index
      %119 = vector.load %arg12[%c0_58, %c0_59, %c0_60] : memref<8x5x21xf32, #tpu.memory_space<vmem>>, vector<8x5x21xf32>
      tpu.vector_store %arg12[%c0_58, %c0_59, %c0_60], %118 {strides = array<i32>} : memref<8x5x21xf32, #tpu.memory_space<vmem>>, vector<8x5x21xf32>,
    } else {
    }
    %c0 = arith.constant 0 : index
    %c0_1 = arith.constant 0 : index
    %c0_2 = arith.constant 0 : index
    %3 = vector.load %arg5[%c0, %c0_1, %c0_2] : memref<1x8x21xf32, #tpu.memory_space<vmem>>, vector<1x8x21xf32>
    %4 = vector.shape_cast %3 : vector<1x8x21xf32> to vector<8x21xf32>
    %c0_3 = arith.constant 0 : index
    %c0_4 = arith.constant 0 : index
    %c0_5 = arith.constant 0 : index
    %5 = vector.load %arg6[%c0_3, %c0_4, %c0_5] : memref<1x8x21xf32, #tpu.memory_space<vmem>>, vector<1x8x21xf32>
    %6 = vector.shape_cast %5 : vector<1x8x21xf32> to vector<8x21xf32>
    %c0_6 = arith.constant 0 : index
    %c0_7 = arith.constant 0 : index
    %c0_8 = arith.constant 0 : index
    %7 = vector.load %arg7[%c0_6, %c0_7, %c0_8] : memref<1x8x21xf32, #tpu.memory_space<vmem>>, vector<1x8x21xf32>
    %8 = vector.shape_cast %7 : vector<1x8x21xf32> to vector<8x21xf32>
    %c0_9 = arith.constant 0 : index
    %c0_10 = arith.constant 0 : index
    %c0_11 = arith.constant 0 : index
    %c0_12 = arith.constant 0 : index
    %9 = vector.load %arg8[%c0_9, %c0_10, %c0_11, %c0_12] : memref<1x8x5x21xbf16, #tpu.memory_space<vmem>>, vector<1x8x5x21xbf16>
    %10 = vector.shape_cast %9 : vector<1x8x5x21xbf16> to vector<8x5x21xbf16>
    %cst = arith.constant 2.000000e+00 : f32
    %11 = vector.broadcast %cst : f32 to vector<8x21xf32>
    %12 = arith.mulf %11, %4 : vector<8x21xf32>
    %13 = arith.mulf %12, %6 : vector<8x21xf32>
    %cst_13 = arith.constant 9.99999996E-13 : f32
    %14 = vector.broadcast %cst_13 : f32 to vector<8x21xf32>
    %15 = arith.cmpf ogt, %13, %14 : vector<8x21xf32>
    %cst_14 = arith.constant 1.000000e+00 : f32
    %16 = vector.broadcast %cst_14 : f32 to vector<8x21xf32>
    %17 = arith.select %15, %13, %16 : vector<8x21xi1>, vector<8x21xf32>
    %18 = arith.mulf %4, %4 : vector<8x21xf32>
    %19 = arith.mulf %6, %6 : vector<8x21xf32>
    %20 = arith.addf %18, %19 : vector<8x21xf32>
    %21 = arith.mulf %8, %8 : vector<8x21xf32>
    %22 = arith.subf %20, %21 : vector<8x21xf32>
    %23 = arith.divf %22, %17 : vector<8x21xf32>
    %cst_15 = arith.constant 0.392699093 : f32
    %24 = vector.broadcast %cst_15 : f32 to vector<8x21xf32>
    %25 = arith.mulf %4, %24 : vector<8x21xf32>
    %26 = math.cos %25 : vector<8x21xf32>
    %cst_16 = arith.constant 1.000000e+00 : f32
    %27 = vector.broadcast %cst_16 : f32 to vector<8x21xf32>
    %28 = arith.addf %26, %27 : vector<8x21xf32>
    %cst_17 = arith.constant 5.000000e-01 : f32
    %29 = vector.broadcast %cst_17 : f32 to vector<8x21xf32>
    %30 = arith.mulf %29, %28 : vector<8x21xf32>
    %cst_18 = arith.constant 8.000000e+00 : f32
    %31 = vector.broadcast %cst_18 : f32 to vector<8x21xf32>
    %32 = arith.cmpf olt, %4, %31 : vector<8x21xf32>
    %33 = arith.extui %32 : vector<8x21xi1> to vector<8x21xi32>
    %34 = arith.sitofp %33 : vector<8x21xi32> to vector<8x21xf32>
    %35 = arith.mulf %30, %34 : vector<8x21xf32>
    %cst_19 = arith.constant 0.392699093 : f32
    %36 = vector.broadcast %cst_19 : f32 to vector<8x21xf32>
    %37 = arith.mulf %6, %36 : vector<8x21xf32>
    %38 = math.cos %37 : vector<8x21xf32>
    %cst_20 = arith.constant 1.000000e+00 : f32
    %39 = vector.broadcast %cst_20 : f32 to vector<8x21xf32>
    %40 = arith.addf %38, %39 : vector<8x21xf32>
    %cst_21 = arith.constant 5.000000e-01 : f32
    %41 = vector.broadcast %cst_21 : f32 to vector<8x21xf32>
    %42 = arith.mulf %41, %40 : vector<8x21xf32>
    %cst_22 = arith.constant 8.000000e+00 : f32
    %43 = vector.broadcast %cst_22 : f32 to vector<8x21xf32>
    %44 = arith.cmpf olt, %6, %43 : vector<8x21xf32>
    %45 = arith.extui %44 : vector<8x21xi1> to vector<8x21xi32>
    %46 = arith.sitofp %45 : vector<8x21xi32> to vector<8x21xf32>
    %47 = arith.mulf %42, %46 : vector<8x21xf32>
    %48 = arith.mulf %35, %47 : vector<8x21xf32>
    %c0_23 = arith.constant 0 : index
    %c0_24 = arith.constant 0 : index
    %c0_25 = arith.constant 0 : index
    %49 = vector.load %arg12[%c0_23, %c0_24, %c0_25] : memref<8x5x21xf32, #tpu.memory_space<vmem>>, vector<8x5x21xf32>
    %50 = tpu.iota {dimensions = array<i32: 1>} : vector<1x21x1xi32>
    %51 = arith.sitofp %50 : vector<1x21x1xi32> to vector<1x21x1xf32>
    %cst_26 = arith.constant 1.000000e-01 : f32
    %52 = vector.broadcast %cst_26 : f32 to vector<1x21x1xf32>
    %53 = arith.mulf %52, %51 : vector<1x21x1xf32>
    %cst_27 = arith.constant -1.000000e+00 : f32
    %54 = vector.broadcast %cst_27 : f32 to vector<1x21x1xf32>
    %55 = arith.addf %54, %53 : vector<1x21x1xf32>
    %56 = vector.shape_cast %23 : vector<8x21xf32> to vector<8x1x21xf32>
    %57 = vector.broadcast %56 : vector<8x1x21xf32> to vector<8x21x21xf32>
    %58 = vector.broadcast %55 : vector<1x21x1xf32> to vector<8x21x21xf32>
    %59 = arith.subf %57, %58 : vector<8x21x21xf32>
    %60 = arith.mulf %59, %59 : vector<8x21x21xf32>
    %cst_28 = arith.constant -2.500000e+01 : f32
    %61 = vector.broadcast %cst_28 : f32 to vector<8x21x21xf32>
    %62 = arith.mulf %61, %60 : vector<8x21x21xf32>
    %63 = math.exp %62 : vector<8x21x21xf32>
    %64 = arith.truncf %63 : vector<8x21x21xf32> to vector<8x21x21xbf16>
    %65 = vector.shape_cast %48 : vector<8x21xf32> to vector<8x1x21xf32>
    %66 = arith.truncf %65 : vector<8x1x21xf32> to vector<8x1x21xbf16>
    %67 = vector.broadcast %66 : vector<8x1x21xbf16> to vector<8x21x21xbf16>
    %68 = arith.mulf %64, %67 : vector<8x21x21xbf16>
    "tpu.trace_start"() <{level = 10 : i32, message = "aek,agk->aeg"}> : () -> ()
    %cst_29 = arith.constant dense<0.000000e+00> : vector<8x5x21xf32>
    %69 = tpu.matmul %10, %68, %cst_29 {dimension_numbers = #tpu.dot_dimension_numbers<[2], [2], [1], [1], [0, 0, 0, 1, 1, 1], [0], [0]>} : vector<8x5x21xbf16>, vector<8x21x21xbf16>, vector<8x5x21xf32> -> vector<8x5x21xf32>
    "tpu.trace_stop"() : () -> ()
    %70 = arith.addf %49, %69 : vector<8x5x21xf32>
    %c0_30 = arith.constant 0 : index
    %c0_31 = arith.constant 0 : index
    %c0_32 = arith.constant 0 : index
    %71 = vector.load %arg12[%c0_30, %c0_31, %c0_32] : memref<8x5x21xf32, #tpu.memory_space<vmem>>, vector<8x5x21xf32>
    tpu.vector_store %arg12[%c0_30, %c0_31, %c0_32], %70 {strides = array<i32>} : memref<8x5x21xf32, #tpu.memory_space<vmem>>, vector<8x5x21xf32>,
    %c0_i32_33 = arith.constant 0 : i32
    %72 = arith.cmpi eq, %arg2, %c0_i32_33 : i32
    %73 = arith.extui %72 : i1 to i32
    %c0_i32_34 = arith.constant 0 : i32
    %74 = arith.cmpi ne, %73, %c0_i32_34 : i32
    scf.if %74 {
      %c0_35 = arith.constant 0 : index
      %c0_36 = arith.constant 0 : index
      %c0_37 = arith.constant 0 : index
      %75 = vector.load %arg12[%c0_35, %c0_36, %c0_37] : memref<8x5x21xf32, #tpu.memory_space<vmem>>, vector<8x5x21xf32>
      %c0_38 = arith.constant 0 : index
      %c0_39 = arith.constant 0 : index
      %c0_40 = arith.constant 0 : index
      %c0_41 = arith.constant 0 : index
      %76 = vector.load %arg10[%c0_38, %c0_39, %c0_40, %c0_41] : memref<1x8x5x21xf32, #tpu.memory_space<vmem>>, vector<1x8x5x21xf32>
      %77 = vector.shape_cast %76 : vector<1x8x5x21xf32> to vector<8x5x21xf32>
      %78 = vector.shape_cast %75 : vector<8x5x21xf32> to vector<1x8x5x21xf32>
      tpu.vector_store %arg10[%c0_38, %c0_39, %c0_40, %c0_41], %78 {strides = array<i32>} : memref<1x8x5x21xf32, #tpu.memory_space<vmem>>, vector<1x8x5x21xf32>,
    } else {
    }
    return
  }
  func.func @transform_0(%arg0: i32, %arg1: i32, %arg2: i32) -> (i32, i32, i32) {
    %c0_i32 = arith.constant 0 : i32
    %c0_i32_0 = arith.constant 0 : i32
    return %arg0, %arg1, %c0_i32 : i32, i32, i32
  }
  func.func @transform_1(%arg0: i32, %arg1: i32, %arg2: i32) -> (i32, i32, i32, i32) {
    %c0_i32 = arith.constant 0 : i32
    %c0_i32_0 = arith.constant 0 : i32
    %c0_i32_1 = arith.constant 0 : i32
    return %arg0, %arg1, %c0_i32, %c0_i32_0 : i32, i32, i32, i32
  }
  func.func @transform_2(%arg0: i32, %arg1: i32, %arg2: i32) -> (i32, i32, i32) {
    %c0_i32 = arith.constant 0 : i32
    return %arg0, %arg1, %arg2 : i32, i32, i32
  }
  func.func @transform_3(%arg0: i32, %arg1: i32, %arg2: i32) -> (i32, i32, i32) {
    %c0_i32 = arith.constant 0 : i32
    return %arg0, %arg1, %arg2 : i32, i32, i32
  }
  func.func @transform_4(%arg0: i32, %arg1: i32, %arg2: i32) -> (i32, i32, i32) {
    %c0_i32 = arith.constant 0 : i32
    return %arg0, %arg1, %arg2 : i32, i32, i32
  }
  func.func @transform_5(%arg0: i32, %arg1: i32, %arg2: i32) -> (i32, i32, i32, i32) {
    %c0_i32 = arith.constant 0 : i32
    %c0_i32_0 = arith.constant 0 : i32
    return %arg0, %arg1, %c0_i32, %arg2 : i32, i32, i32, i32
  }
  func.func @transform_6(%arg0: i32, %arg1: i32, %arg2: i32) -> (i32, i32, i32, i32) {
    %c0_i32 = arith.constant 0 : i32
    %c0_i32_0 = arith.constant 0 : i32
    %c0_i32_1 = arith.constant 0 : i32
    return %arg0, %arg1, %c0_i32, %c0_i32_0 : i32, i32, i32, i32
  }
  func.func @transform_7(%arg0: i32, %arg1: i32, %arg2: i32) -> (i32, i32, i32, i32) {
    %c0_i32 = arith.constant 0 : i32
    %c0_i32_0 = arith.constant 0 : i32
    %c0_i32_1 = arith.constant 0 : i32
    return %arg0, %arg1, %c0_i32, %c0_i32_0 : i32, i32, i32, i32
  }
  func.func @transform_8(%arg0: i32, %arg1: i32, %arg2: i32) -> (i32, i32, i32) {
    %c0_i32 = arith.constant 0 : i32
    %c0_i32_0 = arith.constant 0 : i32
    return %arg0, %arg1, %c0_i32 : i32, i32, i32
  }
}

</mosaic_0001>

<llo_original>
// kernel: tpu_custom_call.1
$region0: #{tpu_custom_call.1}
  #allocation0 [shape = 'u32[]', space=smem, size = 0x4, offset = 0x4, fixed_abs, tag = 'smem constant byte address 0x4 - core index']
  #allocation1 [shape = 'u32[144,128]{1,0:T(1,128)}', space=vmem, size = 0x12000, scoped, tag = 'internal scratch']
  #allocation2 [shape = 'f32[8,5,21]{2,1,0:T(8,128)}', space=vmem, size = 0x8000, scoped, tag = 'scratch operand']
  %s0 = inlined_call_operand.vmem [shape: f32[2,8,7], index: 0, kind: input, shape index: {}]
  %s1 = inlined_call_operand.vmem [shape: bf16[2,8,5,7], index: 1, kind: input, shape index: {}]
  %s2 = inlined_call_operand.vmem [shape: f32[2,8,21], index: 2, kind: input, shape index: {}]
  %s3 = inlined_call_operand.vmem [shape: f32[2,8,21], index: 3, kind: input, shape index: {}]
  %s4 = inlined_call_operand.vmem [shape: f32[2,8,21], index: 4, kind: input, shape index: {}]
  %s5 = inlined_call_operand.vmem [shape: bf16[2,8,5,21], index: 5, kind: input, shape index: {}]
  %s6 = inlined_call_operand.vmem [shape: f32[2,8,5,43], index: 6, kind: output, shape index: {0}]
  %s7 = inlined_call_operand.vmem [shape: f32[2,8,5,21], index: 7, kind: output, shape index: {1}]
  %s8 = inlined_call_operand.vmem [shape: f32[2,8,7], index: 8, kind: output, shape index: {2}]
  %9 = xla_tuple %s6, %s7, %s8
  %s10 = sld [smem:[#allocation0]]
  $region81: #{tpu_custom_call.1} parent=0
    _
  %s12 = ssub.s32 1, %s10
  %s13 = scalar_select 0, %s12, %s10
  loop: start=0, step=1, limit=4
  $region2: #{tpu_custom_call.1} parent=0 // loop_pre_header
    _
  $region3: #{tpu_custom_call.1} parent=0 // loop_header
    %s15 = sphi 0, %s19
    %p16 = scmp.ge.s32.totalorder %s15, 4
    %s22 = sphi 0, %s41
    %s23 = sphi 0, %s37
    %s24 = sphi 0, %s33
    %s25 = sphi 0, %s22
    %s26 = sphi 0, %s23
    %s27 = sphi 0, %s24
    %s28 = sphi 0, %s25
    %s29 = sphi 0, %s26
    %s30 = sphi 0, %s27
    %s46 = sphi 0, %s48
    %s49 = sphi 0, %s46
    %s50 = sphi 0, %s49
    %s66 = sphi 0, %s50
    %s74 = sphi 0, %s76
    %s77 = sphi 0, %s74
    %s78 = sphi 0, %s77
    %s94 = sphi 0, %s78
    %s104 = sphi 0, %s106
    %s107 = sphi 0, %s104
    %s108 = sphi 0, %s107
    %s124 = sphi 0, %s108
    %s134 = sphi 0, %s136
    %s137 = sphi 0, %s134
    %s138 = sphi 0, %s137
    %s154 = sphi 0, %s138
    %s164 = sphi 0, %s166
    %s167 = sphi 0, %s164
    %s168 = sphi 0, %s167
    %s184 = sphi 0, %s168
    %s194 = sphi 0, %s196
    %s197 = sphi 0, %s194
    %s198 = sphi 0, %s197
    %s214 = sphi 0, %s198
    %s222 = sphi 0, %s224
    %s225 = sphi 0, %s222
    %s226 = sphi 0, %s225
    %s242 = sphi 0, %s226
    %s250 = sphi 0, %s252
    %s253 = sphi 0, %s250
    %s254 = sphi 0, %s253
    %s270 = sphi 0, %s254
    %s278 = sphi 0, %s280
    %s281 = sphi 0, %s278
    %s282 = sphi 0, %s281
    %s298 = sphi 0, %s282
  $region4: #{tpu_custom_call.1} parent=0 // loop_header_branch
    %18 = sbr.rel (%p16) target = $region8
  $region5: #{tpu_custom_call.1} parent=0 // loop_body
    %s20 = ssub.s32 %s15, 1
    %s21 = ssub.s32 %s15, 2
    %s31 = sadd.s32 1, %s24
    %p32 = scmp.ge.s32.totalorder %s31, 1
    %s33 = scalar_select %p32, 0, %s31
    %s34 = sadd.s32 1, %s23
    %s35 = scalar_select %p32, %s34, %s23
    %p36 = scmp.ge.s32.totalorder %s35, 1
    %s37 = scalar_select %p36, 0, %s35
    %s38 = sadd.s32 1, %s22
    %s39 = scalar_select %p36, %s38, %s22
    %p40 = scmp.ge.s32.totalorder %s39, 2
    %s41 = scalar_select %p40, 0, %s39
    %s42 = ssub.s32 %s22, %s41
    %s43 = ssub.s32 %s23, %s37
    %s44 = sor.u32 %s42, %s43
    %p45 = scmp.eq.s32.totalorder %s44, 0
    %s47 = sadd.s32 %s46, 1
    %s48 = scalar_select %p45, %s46, %s47
    %p51 = pneg %p45
    %p52 = scmp.eq.s32.totalorder %s15, 1
    %p53 = por %p51, %p52
    %p54 = scmp.ne.s32.totalorder %s46, %s49
    %p55 = scmp.eq.s32.totalorder %s15, 0
    %p56 = por %p54, %p55
    %p57 = scmp.ne.s32.totalorder %s46, %s49
    %p58 = scmp.eq.s32.totalorder %s20, 1
    %p59 = por %p57, %p58
    %p60 = scmp.ne.s32.totalorder %s49, %s50
    %p61 = scmp.eq.s32.totalorder %s20, 0
    %p62 = por %p60, %p61
    %p63 = scmp.ne.s32.totalorder %s49, %s50
    %p64 = scmp.eq.s32.totalorder %s21, 1
    %p65 = por %p63, %p64
    %p67 = scmp.ne.s32.totalorder %s50, %s66
    %p68 = scmp.eq.s32.totalorder %s21, 0
    %p69 = por %p67, %p68
    %s70 = ssub.s32 %s22, %s41
    %s71 = ssub.s32 %s23, %s37
    %s72 = sor.u32 %s70, %s71
    %p73 = scmp.eq.s32.totalorder %s72, 0
    %s75 = sadd.s32 %s74, 1
    %s76 = scalar_select %p73, %s74, %s75
    %p79 = pneg %p73
    %p80 = scmp.eq.s32.totalorder %s15, 1
    %p81 = por %p79, %p80
    %p82 = scmp.ne.s32.totalorder %s74, %s77
    %p83 = scmp.eq.s32.totalorder %s15, 0
    %p84 = por %p82, %p83
    %p85 = scmp.ne.s32.totalorder %s74, %s77
    %p86 = scmp.eq.s32.totalorder %s20, 1
    %p87 = por %p85, %p86
    %p88 = scmp.ne.s32.totalorder %s77, %s78
    %p89 = scmp.eq.s32.totalorder %s20, 0
    %p90 = por %p88, %p89
    %p91 = scmp.ne.s32.totalorder %s77, %s78
    %p92 = scmp.eq.s32.totalorder %s21, 1
    %p93 = por %p91, %p92
    %p95 = scmp.ne.s32.totalorder %s78, %s94
    %p96 = scmp.eq.s32.totalorder %s21, 0
    %p97 = por %p95, %p96
    %s98 = ssub.s32 %s22, %s41
    %s99 = ssub.s32 %s23, %s37
    %s100 = sor.u32 %s98, %s99
    %s101 = ssub.s32 %s24, %s33
    %s102 = sor.u32 %s100, %s101
    %p103 = scmp.eq.s32.totalorder %s102, 0
    %s105 = sadd.s32 %s104, 1
    %s106 = scalar_select %p103, %s104, %s105
    %p109 = pneg %p103
    %p110 = scmp.eq.s32.totalorder %s15, 1
    %p111 = por %p109, %p110
    %p112 = scmp.ne.s32.totalorder %s104, %s107
    %p113 = scmp.eq.s32.totalorder %s15, 0
    %p114 = por %p112, %p113
    %p115 = scmp.ne.s32.totalorder %s104, %s107
    %p116 = scmp.eq.s32.totalorder %s20, 1
    %p117 = por %p115, %p116
    %p118 = scmp.ne.s32.totalorder %s107, %s108
    %p119 = scmp.eq.s32.totalorder %s20, 0
    %p120 = por %p118, %p119
    %p121 = scmp.ne.s32.totalorder %s107, %s108
    %p122 = scmp.eq.s32.totalorder %s21, 1
    %p123 = por %p121, %p122
    %p125 = scmp.ne.s32.totalorder %s108, %s124
    %p126 = scmp.eq.s32.totalorder %s21, 0
    %p127 = por %p125, %p126
    %s128 = ssub.s32 %s22, %s41
    %s129 = ssub.s32 %s23, %s37
    %s130 = sor.u32 %s128, %s129
    %s131 = ssub.s32 %s24, %s33
    %s132 = sor.u32 %s130, %s131
    %p133 = scmp.eq.s32.totalorder %s132, 0
    %s135 = sadd.s32 %s134, 1
    %s136 = scalar_select %p133, %s134, %s135
    %p139 = pneg %p133
    %p140 = scmp.eq.s32.totalorder %s15, 1
    %p141 = por %p139, %p140
    %p142 = scmp.ne.s32.totalorder %s134, %s137
    %p143 = scmp.eq.s32.totalorder %s15, 0
    %p144 = por %p142, %p143
    %p145 = scmp.ne.s32.totalorder %s134, %s137
    %p146 = scmp.eq.s32.totalorder %s20, 1
    %p147 = por %p145, %p146
    %p148 = scmp.ne.s32.totalorder %s137, %s138
    %p149 = scmp.eq.s32.totalorder %s20, 0
    %p150 = por %p148, %p149
    %p151 = scmp.ne.s32.totalorder %s137, %s138
    %p152 = scmp.eq.s32.totalorder %s21, 1
    %p153 = por %p151, %p152
    %p155 = scmp.ne.s32.totalorder %s138, %s154
    %p156 = scmp.eq.s32.totalorder %s21, 0
    %p157 = por %p155, %p156
    %s158 = ssub.s32 %s22, %s41
    %s159 = ssub.s32 %s23, %s37
    %s160 = sor.u32 %s158, %s159
    %s161 = ssub.s32 %s24, %s33
    %s162 = sor.u32 %s160, %s161
    %p163 = scmp.eq.s32.totalorder %s162, 0
    %s165 = sadd.s32 %s164, 1
    %s166 = scalar_select %p163, %s164, %s165
    %p169 = pneg %p163
    %p170 = scmp.eq.s32.totalorder %s15, 1
    %p171 = por %p169, %p170
    %p172 = scmp.ne.s32.totalorder %s164, %s167
    %p173 = scmp.eq.s32.totalorder %s15, 0
    %p174 = por %p172, %p173
    %p175 = scmp.ne.s32.totalorder %s164, %s167
    %p176 = scmp.eq.s32.totalorder %s20, 1
    %p177 = por %p175, %p176
    %p178 = scmp.ne.s32.totalorder %s167, %s168
    %p179 = scmp.eq.s32.totalorder %s20, 0
    %p180 = por %p178, %p179
    %p181 = scmp.ne.s32.totalorder %s167, %s168
    %p182 = scmp.eq.s32.totalorder %s21, 1
    %p183 = por %p181, %p182
    %p185 = scmp.ne.s32.totalorder %s168, %s184
    %p186 = scmp.eq.s32.totalorder %s21, 0
    %p187 = por %p185, %p186
    %s188 = ssub.s32 %s22, %s41
    %s189 = ssub.s32 %s23, %s37
    %s190 = sor.u32 %s188, %s189
    %s191 = ssub.s32 %s24, %s33
    %s192 = sor.u32 %s190, %s191
    %p193 = scmp.eq.s32.totalorder %s192, 0
    %s195 = sadd.s32 %s194, 1
    %s196 = scalar_select %p193, %s194, %s195
    %p199 = pneg %p193
    %p200 = scmp.eq.s32.totalorder %s15, 1
    %p201 = por %p199, %p200
    %p202 = scmp.ne.s32.totalorder %s194, %s197
    %p203 = scmp.eq.s32.totalorder %s15, 0
    %p204 = por %p202, %p203
    %p205 = scmp.ne.s32.totalorder %s194, %s197
    %p206 = scmp.eq.s32.totalorder %s20, 1
    %p207 = por %p205, %p206
    %p208 = scmp.ne.s32.totalorder %s197, %s198
    %p209 = scmp.eq.s32.totalorder %s20, 0
    %p210 = por %p208, %p209
    %p211 = scmp.ne.s32.totalorder %s197, %s198
    %p212 = scmp.eq.s32.totalorder %s21, 1
    %p213 = por %p211, %p212
    %p215 = scmp.ne.s32.totalorder %s198, %s214
    %p216 = scmp.eq.s32.totalorder %s21, 0
    %p217 = por %p215, %p216
    %s218 = ssub.s32 %s22, %s41
    %s219 = ssub.s32 %s23, %s37
    %s220 = sor.u32 %s218, %s219
    %p221 = scmp.eq.s32.totalorder %s220, 0
    %s223 = sadd.s32 %s222, 1
    %s224 = scalar_select %p221, %s222, %s223
    %p227 = pneg %p221
    %p228 = scmp.eq.s32.totalorder %s15, 1
    %p229 = por %p227, %p228
    %p230 = scmp.ne.s32.totalorder %s222, %s225
    %p231 = scmp.eq.s32.totalorder %s15, 0
    %p232 = por %p230, %p231
    %p233 = scmp.ne.s32.totalorder %s222, %s225
    %p234 = scmp.eq.s32.totalorder %s20, 1
    %p235 = por %p233, %p234
    %p236 = scmp.ne.s32.totalorder %s225, %s226
    %p237 = scmp.eq.s32.totalorder %s20, 0
    %p238 = por %p236, %p237
    %p239 = scmp.ne.s32.totalorder %s225, %s226
    %p240 = scmp.eq.s32.totalorder %s21, 1
    %p241 = por %p239, %p240
    %p243 = scmp.ne.s32.totalorder %s226, %s242
    %p244 = scmp.eq.s32.totalorder %s21, 0
    %p245 = por %p243, %p244
    %s246 = ssub.s32 %s22, %s41
    %s247 = ssub.s32 %s23, %s37
    %s248 = sor.u32 %s246, %s247
    %p249 = scmp.eq.s32.totalorder %s248, 0
    %s251 = sadd.s32 %s250, 1
    %s252 = scalar_select %p249, %s250, %s251
    %p255 = pneg %p249
    %p256 = scmp.eq.s32.totalorder %s15, 1
    %p257 = por %p255, %p256
    %p258 = scmp.ne.s32.totalorder %s250, %s253
    %p259 = scmp.eq.s32.totalorder %s15, 0
    %p260 = por %p258, %p259
    %p261 = scmp.ne.s32.totalorder %s250, %s253
    %p262 = scmp.eq.s32.totalorder %s20, 1
    %p263 = por %p261, %p262
    %p264 = scmp.ne.s32.totalorder %s253, %s254
    %p265 = scmp.eq.s32.totalorder %s20, 0
    %p266 = por %p264, %p265
    %p267 = scmp.ne.s32.totalorder %s253, %s254
    %p268 = scmp.eq.s32.totalorder %s21, 1
    %p269 = por %p267, %p268
    %p271 = scmp.ne.s32.totalorder %s254, %s270
    %p272 = scmp.eq.s32.totalorder %s21, 0
    %p273 = por %p271, %p272
    %s274 = ssub.s32 %s22, %s41
    %s275 = ssub.s32 %s23, %s37
    %s276 = sor.u32 %s274, %s275
    %p277 = scmp.eq.s32.totalorder %s276, 0
    %s279 = sadd.s32 %s278, 1
    %s280 = scalar_select %p277, %s278, %s279
    %p283 = pneg %p277
    %p284 = scmp.eq.s32.totalorder %s15, 1
    %p285 = por %p283, %p284
    %p286 = scmp.ne.s32.totalorder %s278, %s281
    %p287 = scmp.eq.s32.totalorder %s15, 0
    %p288 = por %p286, %p287
    %p289 = scmp.ne.s32.totalorder %s278, %s281
    %p290 = scmp.eq.s32.totalorder %s20, 1
    %p291 = por %p289, %p290
    %p292 = scmp.ne.s32.totalorder %s281, %s282
    %p293 = scmp.eq.s32.totalorder %s20, 0
    %p294 = por %p292, %p293
    %p295 = scmp.ne.s32.totalorder %s281, %s282
    %p296 = scmp.eq.s32.totalorder %s21, 1
    %p297 = por %p295, %p296
    %p299 = scmp.ne.s32.totalorder %s282, %s298
    %p300 = scmp.eq.s32.totalorder %s21, 0
    %p301 = por %p299, %p300
    %p302 = scmp.le.s32.totalorder 1, %s15
    %p303 = scmp.lt.s32.totalorder %s15, 3
    %p304 = pnand %p302, %p303
    %p305 = pneg %p304
    // Predicated region
    $region9: #{tpu_custom_call.1} parent=5 // pred_check
      _
    $region10: #{tpu_custom_call.1} parent=5 // pred_check_branch
      %307 = sbr.rel (%p304) target = $region12
    $region11: #{tpu_custom_call.1} parent=5 // pred_region
      %s308 = ssub.s32 %s15, 1
    $region12: #{tpu_custom_call.1} parent=5 // pred_fallthru
      _
    %p309 = scmp.lt.s32.totalorder %s15, 2
    // Predicated region
    $region13: #{tpu_custom_call.1} parent=5 // pred_check
      %p310 = pneg %p309
    $region14: #{tpu_custom_call.1} parent=5 // pred_check_branch
      %312 = sbr.rel (%p310) target = $region16
    $region15: #{tpu_custom_call.1} parent=5 // pred_region
      // Predicated region
      $region17: #{tpu_custom_call.1} parent=15 // pred_check
        %p313 = pneg %p56
      $region18: #{tpu_custom_call.1} parent=15 // pred_check_branch
        %315 = sbr.rel (%p313) target = $region20
      $region19: #{tpu_custom_call.1} parent=15 // pred_region
        %p316 = scmp.lt.s32.totalorder %s22, 1
        %s317 = scalar_select %p316, %s22, 1
        %p318 = scmp.lt.s32.totalorder %s23, 0
        %s319 = scalar_select %p318, %s23, 0
        %s320 = sadd.s32 %s319, %s317
        %s321 = smul.addr %s320, 8
        %s322 = scalar_lea.vmem %s0, %s321
      $region20: #{tpu_custom_call.1} parent=15 // pred_fallthru
        _
      // Predicated region
      $region21: #{tpu_custom_call.1} parent=15 // pred_check
        %p323 = pneg %p84
      $region22: #{tpu_custom_call.1} parent=15 // pred_check_branch
        %325 = sbr.rel (%p323) target = $region24
      $region23: #{tpu_custom_call.1} parent=15 // pred_region
        %s326 = smul.u32 8, %s23
        %p327 = scmp.lt.s32.totalorder %s22, 1
        %s328 = scalar_select %p327, %s22, 1
        %p329 = scmp.lt.s32.totalorder %s326, 7
        %s330 = scalar_select %p329, %s326, 7
        %s331 = smul.addr %s328, 8
        %s332 = sadd.s32 %s330, %s331
        %s333 = smul.addr %s332, 4
        %s334 = scalar_lea.vmem %s1, %s333
        %s335 = smul.u32 8, %s23
      $region24: #{tpu_custom_call.1} parent=15 // pred_fallthru
        _
      // Predicated region
      $region25: #{tpu_custom_call.1} parent=15 // pred_check
        %p336 = pneg %p114
      $region26: #{tpu_custom_call.1} parent=15 // pred_check_branch
        %338 = sbr.rel (%p336) target = $region28
      $region27: #{tpu_custom_call.1} parent=15 // pred_region
        %p339 = scmp.lt.s32.totalorder %s22, 1
        %s340 = scalar_select %p339, %s22, 1
        %p341 = scmp.lt.s32.totalorder %s23, 0
        %s342 = scalar_select %p341, %s23, 0
        %p343 = scmp.lt.s32.totalorder %s24, 0
        %s344 = scalar_select %p343, %s24, 0
        %s345 = sadd.s32 %s344, %s342
        %s346 = sadd.s32 %s345, %s340
        %s347 = smul.addr %s346, 8
        %s348 = scalar_lea.vmem %s2, %s347
      $region28: #{tpu_custom_call.1} parent=15 // pred_fallthru
        _
      // Predicated region
      $region29: #{tpu_custom_call.1} parent=15 // pred_check
        %p349 = pneg %p144
      $region30: #{tpu_custom_call.1} parent=15 // pred_check_branch
        %351 = sbr.rel (%p349) target = $region32
      $region31: #{tpu_custom_call.1} parent=15 // pred_region
        %p352 = scmp.lt.s32.totalorder %s22, 1
        %s353 = scalar_select %p352, %s22, 1
        %p354 = scmp.lt.s32.totalorder %s23, 0
        %s355 = scalar_select %p354, %s23, 0
        %p356 = scmp.lt.s32.totalorder %s24, 0
        %s357 = scalar_select %p356, %s24, 0
        %s358 = sadd.s32 %s357, %s355
        %s359 = sadd.s32 %s358, %s353
        %s360 = smul.addr %s359, 8
        %s361 = scalar_lea.vmem %s3, %s360
      $region32: #{tpu_custom_call.1} parent=15 // pred_fallthru
        _
      // Predicated region
      $region33: #{tpu_custom_call.1} parent=15 // pred_check
        %p362 = pneg %p174
      $region34: #{tpu_custom_call.1} parent=15 // pred_check_branch
        %364 = sbr.rel (%p362) target = $region36
      $region35: #{tpu_custom_call.1} parent=15 // pred_region
        %p365 = scmp.lt.s32.totalorder %s22, 1
        %s366 = scalar_select %p365, %s22, 1
        %p367 = scmp.lt.s32.totalorder %s23, 0
        %s368 = scalar_select %p367, %s23, 0
        %p369 = scmp.lt.s32.totalorder %s24, 0
        %s370 = scalar_select %p369, %s24, 0
        %s371 = sadd.s32 %s370, %s368
        %s372 = sadd.s32 %s371, %s366
        %s373 = smul.addr %s372, 8
        %s374 = scalar_lea.vmem %s4, %s373
      $region36: #{tpu_custom_call.1} parent=15 // pred_fallthru
        _
      // Predicated region
      $region37: #{tpu_custom_call.1} parent=15 // pred_check
        %p375 = pneg %p204
      $region38: #{tpu_custom_call.1} parent=15 // pred_check_branch
        %377 = sbr.rel (%p375) target = $region40
      $region39: #{tpu_custom_call.1} parent=15 // pred_region
        %s378 = smul.u32 8, %s23
        %p379 = scmp.lt.s32.totalorder %s22, 1
        %s380 = scalar_select %p379, %s22, 1
        %p381 = scmp.lt.s32.totalorder %s378, 7
        %s382 = scalar_select %p381, %s378, 7
        %p383 = scmp.lt.s32.totalorder %s24, 0
        %s384 = scalar_select %p383, %s24, 0
        %s385 = sadd.s32 %s384, %s382
        %s386 = smul.addr %s380, 8
        %s387 = sadd.s32 %s385, %s386
        %s388 = smul.addr %s387, 4
        %s389 = scalar_lea.vmem %s5, %s388
        %s390 = smul.u32 8, %s23
      $region40: #{tpu_custom_call.1} parent=15 // pred_fallthru
        _
    $region16: #{tpu_custom_call.1} parent=5 // pred_fallthru
      _
    %p391 = scmp.le.s32.totalorder 1, %s15
    %p392 = scmp.lt.s32.totalorder %s15, 3
    %p393 = pnand %p391, %p392
    %p394 = pneg %p393
    // Predicated region
    $region41: #{tpu_custom_call.1} parent=5 // pred_check
      _
    $region42: #{tpu_custom_call.1} parent=5 // pred_check_branch
      %396 = sbr.rel (%p393) target = $region44
    $region43: #{tpu_custom_call.1} parent=5 // pred_region
      %s397 = ssub.s32 %s15, 1
      %p398 = scmp.lt.s32.totalorder %s25, 1
      %s399 = scalar_select %p398, %s25, 1
      %p400 = scmp.lt.s32.totalorder %s26, 0
      %s401 = scalar_select %p400, %s26, 0
      %s402 = sadd.s32 %s401, %s399
      %s403 = smul.addr %s402, 8
      %s404 = scalar_lea.vmem %s0, %s403
      %p405 = pneg %p62
      %p406 = pneg %p59
      %s407 = smul.u32 8, %s26
      %p408 = scmp.lt.s32.totalorder %s25, 1
      %s409 = scalar_select %p408, %s25, 1
      %p410 = scmp.lt.s32.totalorder %s407, 7
      %s411 = scalar_select %p410, %s407, 7
      %s412 = smul.addr %s409, 8
      %s413 = sadd.s32 %s411, %s412
      %s414 = smul.addr %s413, 4
      %s415 = scalar_lea.vmem %s1, %s414
      %p416 = pneg %p90
      %p417 = pneg %p87
      %p418 = scmp.lt.s32.totalorder %s25, 1
      %s419 = scalar_select %p418, %s25, 1
      %p420 = scmp.lt.s32.totalorder %s26, 0
      %s421 = scalar_select %p420, %s26, 0
      %p422 = scmp.lt.s32.totalorder %s27, 0
      %s423 = scalar_select %p422, %s27, 0
      %s424 = sadd.s32 %s423, %s421
      %s425 = sadd.s32 %s424, %s419
      %s426 = smul.addr %s425, 8
      %s427 = scalar_lea.vmem %s2, %s426
      %p428 = pneg %p120
      %p429 = pneg %p117
      %p430 = scmp.lt.s32.totalorder %s25, 1
      %s431 = scalar_select %p430, %s25, 1
      %p432 = scmp.lt.s32.totalorder %s26, 0
      %s433 = scalar_select %p432, %s26, 0
      %p434 = scmp.lt.s32.totalorder %s27, 0
      %s435 = scalar_select %p434, %s27, 0
      %s436 = sadd.s32 %s435, %s433
      %s437 = sadd.s32 %s436, %s431
      %s438 = smul.addr %s437, 8
      %s439 = scalar_lea.vmem %s3, %s438
      %p440 = pneg %p150
      %p441 = pneg %p147
      %p442 = scmp.lt.s32.totalorder %s25, 1
      %s443 = scalar_select %p442, %s25, 1
      %p444 = scmp.lt.s32.totalorder %s26, 0
      %s445 = scalar_select %p444, %s26, 0
      %p446 = scmp.lt.s32.totalorder %s27, 0
      %s447 = scalar_select %p446, %s27, 0
      %s448 = sadd.s32 %s447, %s445
      %s449 = sadd.s32 %s448, %s443
      %s450 = smul.addr %s449, 8
      %s451 = scalar_lea.vmem %s4, %s450
      %p452 = pneg %p180
      %p453 = pneg %p177
      %s454 = smul.u32 8, %s26
      %p455 = scmp.lt.s32.totalorder %s25, 1
      %s456 = scalar_select %p455, %s25, 1
      %p457 = scmp.lt.s32.totalorder %s454, 7
      %s458 = scalar_select %p457, %s454, 7
      %p459 = scmp.lt.s32.totalorder %s27, 0
      %s460 = scalar_select %p459, %s27, 0
      %s461 = sadd.s32 %s460, %s458
      %s462 = smul.addr %s456, 8
      %s463 = sadd.s32 %s461, %s462
      %s464 = smul.addr %s463, 4
      %s465 = scalar_lea.vmem %s5, %s464
      %p466 = pneg %p210
      %p467 = pneg %p207
      %p468 = pneg %p238
      %p469 = pneg %p235
      %s470 = smul.u32 8, %s26
      %p471 = scmp.lt.s32.totalorder %s25, 1
      %s472 = scalar_select %p471, %s25, 1
      %p473 = scmp.lt.s32.totalorder %s470, 7
      %s474 = scalar_select %p473, %s470, 7
      %s475 = smul.addr %s472, 8
      %s476 = sadd.s32 %s474, %s475
      %s477 = smul.addr %s476, 8
      %s478 = scalar_lea.vmem %s6, %s477
      %p479 = pneg %p266
      %p480 = pneg %p263
      %s481 = smul.u32 8, %s26
      %p482 = scmp.lt.s32.totalorder %s25, 1
      %s483 = scalar_select %p482, %s25, 1
      %p484 = scmp.lt.s32.totalorder %s481, 7
      %s485 = scalar_select %p484, %s481, 7
      %s486 = smul.addr %s483, 8
      %s487 = sadd.s32 %s485, %s486
      %s488 = smul.addr %s487, 8
      %s489 = scalar_lea.vmem %s7, %s488
      %p490 = pneg %p294
      %p491 = pneg %p291
      %p492 = scmp.lt.s32.totalorder %s25, 1
      %s493 = scalar_select %p492, %s25, 1
      %p494 = scmp.lt.s32.totalorder %s26, 0
      %s495 = scalar_select %p494, %s26, 0
      %s496 = sadd.s32 %s495, %s493
      %s497 = smul.addr %s496, 8
      %s498 = scalar_lea.vmem %s8, %s497
      %p499 = scmp.lt.s32.totalorder %s25, 1
      %s500 = scalar_select %p499, %s25, 1
      %p501 = scmp.lt.s32.totalorder %s26, 0
      %s502 = scalar_select %p501, %s26, 0
      %s503 = sadd.s32 %s502, %s500
      %s504 = smul.addr %s503, 8
      %s505 = scalar_lea.vmem %s0, %s504
      %s506 = smul.u32 8, %s26
      %p507 = scmp.lt.s32.totalorder %s25, 1
      %s508 = scalar_select %p507, %s25, 1
      %p509 = scmp.lt.s32.totalorder %s506, 7
      %s510 = scalar_select %p509, %s506, 7
      %s511 = smul.addr %s508, 8
      %s512 = sadd.s32 %s510, %s511
      %s513 = smul.addr %s512, 4
      %s514 = scalar_lea.vmem %s1, %s513
      %s515 = smul.u32 8, %s26
      %p516 = scmp.lt.s32.totalorder %s25, 1
      %s517 = scalar_select %p516, %s25, 1
      %p518 = scmp.lt.s32.totalorder %s26, 0
      %s519 = scalar_select %p518, %s26, 0
      %p520 = scmp.lt.s32.totalorder %s27, 0
      %s521 = scalar_select %p520, %s27, 0
      %s522 = sadd.s32 %s521, %s519
      %s523 = sadd.s32 %s522, %s517
      %s524 = smul.addr %s523, 8
      %s525 = scalar_lea.vmem %s2, %s524
      %p526 = scmp.lt.s32.totalorder %s25, 1
      %s527 = scalar_select %p526, %s25, 1
      %p528 = scmp.lt.s32.totalorder %s26, 0
      %s529 = scalar_select %p528, %s26, 0
      %p530 = scmp.lt.s32.totalorder %s27, 0
      %s531 = scalar_select %p530, %s27, 0
      %s532 = sadd.s32 %s531, %s529
      %s533 = sadd.s32 %s532, %s527
      %s534 = smul.addr %s533, 8
      %s535 = scalar_lea.vmem %s3, %s534
      %p536 = scmp.lt.s32.totalorder %s25, 1
      %s537 = scalar_select %p536, %s25, 1
      %p538 = scmp.lt.s32.totalorder %s26, 0
      %s539 = scalar_select %p538, %s26, 0
      %p540 = scmp.lt.s32.totalorder %s27, 0
      %s541 = scalar_select %p540, %s27, 0
      %s542 = sadd.s32 %s541, %s539
      %s543 = sadd.s32 %s542, %s537
      %s544 = smul.addr %s543, 8
      %s545 = scalar_lea.vmem %s4, %s544
      %s546 = smul.u32 8, %s26
      %p547 = scmp.lt.s32.totalorder %s25, 1
      %s548 = scalar_select %p547, %s25, 1
      %p549 = scmp.lt.s32.totalorder %s546, 7
      %s550 = scalar_select %p549, %s546, 7
      %p551 = scmp.lt.s32.totalorder %s27, 0
      %s552 = scalar_select %p551, %s27, 0
      %s553 = sadd.s32 %s552, %s550
      %s554 = smul.addr %s548, 8
      %s555 = sadd.s32 %s553, %s554
      %s556 = smul.addr %s555, 4
      %s557 = scalar_lea.vmem %s5, %s556
      %s558 = smul.u32 8, %s26
      %s559 = smul.u32 8, %s26
      %p560 = scmp.lt.s32.totalorder %s25, 1
      %s561 = scalar_select %p560, %s25, 1
      %p562 = scmp.lt.s32.totalorder %s559, 7
      %s563 = scalar_select %p562, %s559, 7
      %s564 = smul.addr %s561, 8
      %s565 = sadd.s32 %s563, %s564
      %s566 = smul.addr %s565, 8
      %s567 = scalar_lea.vmem %s6, %s566
      %s568 = smul.u32 8, %s26
      %s569 = smul.u32 8, %s26
      %p570 = scmp.lt.s32.totalorder %s25, 1
      %s571 = scalar_select %p570, %s25, 1
      %p572 = scmp.lt.s32.totalorder %s569, 7
      %s573 = scalar_select %p572, %s569, 7
      %s574 = smul.addr %s571, 8
      %s575 = sadd.s32 %s573, %s574
      %s576 = smul.addr %s575, 8
      %s577 = scalar_lea.vmem %s7, %s576
      %s578 = smul.u32 8, %s26
      %p579 = scmp.lt.s32.totalorder %s25, 1
      %s580 = scalar_select %p579, %s25, 1
      %p581 = scmp.lt.s32.totalorder %s26, 0
      %s582 = scalar_select %p581, %s26, 0
      %s583 = sadd.s32 %s582, %s580
      %s584 = smul.addr %s583, 8
      %s585 = scalar_lea.vmem %s8, %s584
      %p587 = scmp.eq.s32.totalorder %s27, 0
      // Predicated region
      $region45: #{tpu_custom_call.1} parent=43 // pred_check
        %p588 = pneg %p587
      $region46: #{tpu_custom_call.1} parent=43 // pred_check_branch
        %590 = sbr.rel (%p588) target = $region48
      $region47: #{tpu_custom_call.1} parent=43 // pred_region
        %v591 = vld [vmem:[%s505] sm:$0xff]
        %v592 = vld [vmem:[%s514] sm:$0x7]
        %v593 = vld [vmem:[%s514 + $0x4] sm:$0x7]
        %v594 = vld [vmem:[%s514 + $0x8] sm:$0x7]
        %v595 = vld [vmem:[%s514 + $0xc] sm:$0x7]
        %v596 = vld [vmem:[%s514 + $0x10] sm:$0x7]
        %v597 = vld [vmem:[%s514 + $0x14] sm:$0x7]
        %v598 = vld [vmem:[%s514 + $0x18] sm:$0x7]
        %v599 = vld [vmem:[%s514 + $0x1c] sm:$0x7]
        %v600 = vmul.f32 %v591, 0.3926991
        %v601 = vand.u32 2147483647, %v600
        %vm602 = vcmp.le.f32.partialorder %v601, 0.7853982
        %vm603 = vcmp.lt.s32.totalorder %v600, 0
        %v604 = vand.u32 %v600, 2139095040
        %v605 = vshrl.u32 %v604, 23
        %v606 = vsub.s32 %v605, 127
        %v607 = vand.u32 2147483647, %v600
        %v608 = vand.u32 %v607, 8388607
        %v609 = vor.u32 %v608, 8388608
        %v610 = vsub.s32 0, %v609
        %v611 = vadd.s32 %v606, 1
        %vm612 = vcmp.gt.s32.totalorder %v611, 0
        %v613 = vsel %vm612, %v611, 0
        %v614 = vshrl.u32 %v613, 5
        %v615 = vand.u32 %v613, 31
        %v616 = vsub.s32 32, %v615
        %v617 = vshrl.u32 683565275, %v616
        %v618 = vshll.u32 683565275, %v615
        %v619 = vshrl.u32 2475754826, %v616
        %v620 = vor.u32 %v618, %v619
        %v621 = vshll.u32 2475754826, %v615
        %v622 = vshrl.u32 2131351028, %v616
        %v623 = vor.u32 %v621, %v622
        %v624 = vshll.u32 2131351028, %v615
        %v625 = vshrl.u32 2102212464, %v616
        %v626 = vor.u32 %v624, %v625
        %v627 = vshll.u32 2102212464, %v615
        %v628 = vshrl.u32 920167782, %v616
        %v629 = vor.u32 %v627, %v628
        %v630 = vshll.u32 920167782, %v615
        %v631 = vshrl.u32 1326507024, %v616
        %v632 = vor.u32 %v630, %v631
        %vm633 = vcmp.lt.s32.totalorder %v614, 1
        %vm634 = vcmp.lt.s32.totalorder %v614, 2
        %vm635 = vcmp.lt.s32.totalorder %v614, 3
        %vm636 = vcmp.lt.s32.totalorder %v614, 4
        %v637 = vsel %vm633, %v617, %v620
        %v638 = vsel %vm636, %v626, 2102212464
        %v639 = vsel %vm635, %v623, %v638
        %v640 = vsel %vm634, %v637, %v639
        %v641 = vsel %vm633, %v620, %v623
        %v642 = vsel %vm636, %v629, 920167782
        %v643 = vsel %vm635, %v626, %v642
        %v644 = vsel %vm634, %v641, %v643
        %v645 = vsel %vm633, %v623, %v626
        %v646 = vsel %vm636, %v632, 1326507024
        %v647 = vsel %vm635, %v629, %v646
        %v648 = vsel %vm634, %v645, %v647
        %v649 = vshll.u32 %v609, 8
        %v650 = vmul.u32.u64.compose %v649, %v648
        %v651 = vextract.low.u32 %v650
        %v652 = vextract.high.u32 %v650
        %v653 = vmul.u32.u64.compose %v649, %v644
        %v654 = vextract.low.u32 %v653
        %v655 = vextract.high.u32 %v653
        %v656 = vmul.u32 %v649, %v640
        %v657 = vadd.s32 %v652, %v654
        %vm658 = vc.u32 %v652, %v654
        %v659 = vadd.s32 %v655, 1
        %v660 = vsel %vm658, %v659, %v655
        %v661 = vadd.s32 %v656, %v660
        %v662 = vadd.s32 %v661, 536870912
        %v663 = vshrl.u32 %v662, 30
        %v664 = vshll.u32 %v663, 30
        %v665 = vsub.s32 %v661, %v664
        %vm666 = vcmp.lt.s32.totalorder %v665, 0
        %v667 = vsub.s32 0, %v665
        %v668 = vsel %vm666, %v667, %v665
        %v669 = vclz %v668
        %v670 = vsub.s32 %v669, 2
        %vm671 = vcmp.gt.s32.totalorder 0, %v670
        %v672 = vsel %vm671, 0, %v670
        %v673 = vsub.s32 32, %v672
        %v674 = vshll.u32 %v665, %v672
        %v675 = vshrl.u32 %v657, %v673
        %v676 = vor.u32 %v674, %v675
        %v677 = vsub.s32 4294967266, %v672
        %v678 = vadd.s32 %v677, 127
        %v679 = vshll.u32 %v678, 23
        %v680 = vor.u32 4788187, %v679
        %v681 = vand.u32 2147483647, %v680
        %v683 = vcvt.s32.f32 %v676
        %v684 = vmul.f32 %v683, %v681
        %v685 = vxor.u32 %v684, 2147483648
        %v686 = vsel %vm603, %v685, %v684
        %v687 = vsub.s32 4, %v663
        %v688 = vsel %vm603, %v687, %v663
        %v689 = vsel %vm602, %v600, %v686
        %v690 = vsel %vm602, 0, %v688
        %v691 = vcosq.f32.pop %v689
        %v692 = vsinq.f32.pop %v689
        %vm693 = vweird.f32 %v600
        %v694 = vand.u32 %v690, 3
        %vm695 = vcmp.lt.s32.totalorder %v694, 2
        %vm696 = vcmp.eq.s32.totalorder %v694, 0
        %v697 = vxor.u32 %v692, 2147483648
        %v698 = vsel %vm696, %v691, %v697
        %vm699 = vcmp.eq.s32.totalorder %v694, 2
        %v700 = vxor.u32 %v691, 2147483648
        %v701 = vsel %vm699, %v700, %v692
        %v702 = vsel %vm695, %v698, %v701
        %v703 = vsel %vm693, nan, %v702
        %v704 = vadd.f32 %v703, 1.0
        %v705 = vmul.f32 %v704, 0.5
        %vm706 = vcmp.lt.f32.partialorder %v591, 8.0
        %v707 = vsel %vm706, 1, 0
        %v708 = vcvt.s32.f32 %v707
        %v709 = vmul.f32 %v705, %v708
        %v710 = vlaneseq
        %v711 = vand.u32 %v710, 127
        %v712 = vcvt.s32.f32 %v711
        %v713 = vmul.f32 %v712, 0.1
        %v714 = vadd.f32 %v713, 0.8
        %v715 = vlaneseq
        %v716 = vshrl.u32 %v715, 7
        %v717 = vsub.s32 0, %v716
        %v718 = vrot.slane %v591, %v717
        %720 = vbcast.lane.b32.xlu0 %v718, 256
        %v721 = vpop.permute.xlu0 %720
        %v722 = vlaneseq
        %v723 = vshrl.u32 %v722, 7
        %v724 = vsub.s32 1, %v723
        %v725 = vrot.slane %v591, %v724
        %727 = vbcast.lane.b32.xlu0 %v725, 256
        %v728 = vpop.permute.xlu0 %727
        %v729 = vlaneseq
        %v730 = vshrl.u32 %v729, 7
        %v731 = vsub.s32 2, %v730
        %v732 = vrot.slane %v591, %v731
        %734 = vbcast.lane.b32.xlu0 %v732, 256
        %v735 = vpop.permute.xlu0 %734
        %v736 = vlaneseq
        %v737 = vshrl.u32 %v736, 7
        %v738 = vsub.s32 3, %v737
        %v739 = vrot.slane %v591, %v738
        %741 = vbcast.lane.b32.xlu0 %v739, 256
        %v742 = vpop.permute.xlu0 %741
        %v743 = vlaneseq
        %v744 = vshrl.u32 %v743, 7
        %v745 = vsub.s32 4, %v744
        %v746 = vrot.slane %v591, %v745
        %748 = vbcast.lane.b32.xlu0 %v746, 256
        %v749 = vpop.permute.xlu0 %748
        %v750 = vlaneseq
        %v751 = vshrl.u32 %v750, 7
        %v752 = vsub.s32 5, %v751
        %v753 = vrot.slane %v591, %v752
        %755 = vbcast.lane.b32.xlu0 %v753, 256
        %v756 = vpop.permute.xlu0 %755
        %v757 = vlaneseq
        %v758 = vshrl.u32 %v757, 7
        %v759 = vsub.s32 6, %v758
        %v760 = vrot.slane %v591, %v759
        %762 = vbcast.lane.b32.xlu0 %v760, 256
        %v763 = vpop.permute.xlu0 %762
        %v764 = vlaneseq
        %v765 = vshrl.u32 %v764, 7
        %v766 = vsub.s32 7, %v765
        %v767 = vrot.slane %v591, %v766
        %769 = vbcast.lane.b32.xlu0 %v767, 256
        %v770 = vpop.permute.xlu0 %769
        %v771 = vsub.f32 %v721, %v714
        %v772 = vsub.f32 %v728, %v714
        %v773 = vsub.f32 %v735, %v714
        %v774 = vsub.f32 %v742, %v714
        %v775 = vsub.f32 %v749, %v714
        %v776 = vsub.f32 %v756, %v714
        %v777 = vsub.f32 %v763, %v714
        %v778 = vsub.f32 %v770, %v714
        %v779 = vmul.f32 %v771, %v771
        %v780 = vmul.f32 %v772, %v772
        %v781 = vmul.f32 %v773, %v773
        %v782 = vmul.f32 %v774, %v774
        %v783 = vmul.f32 %v775, %v775
        %v784 = vmul.f32 %v776, %v776
        %v785 = vmul.f32 %v777, %v777
        %v786 = vmul.f32 %v778, %v778
        %v787 = vmul.f32 %v779, -100.0
        %v788 = vmul.f32 %v780, -100.0
        %v789 = vmul.f32 %v781, -100.0
        %v790 = vmul.f32 %v782, -100.0
        %v791 = vmul.f32 %v783, -100.0
        %v792 = vmul.f32 %v784, -100.0
        %v793 = vmul.f32 %v785, -100.0
        %v794 = vmul.f32 %v786, -100.0
        %v795 = vmul.f32 %v787, 1.442695
        %v796 = vpow.pop %v795
        %v797 = vmul.f32 %v788, 1.442695
        %v798 = vpow.pop %v797
        %v799 = vmul.f32 %v789, 1.442695
        %v800 = vpow.pop %v799
        %v801 = vmul.f32 %v790, 1.442695
        %v802 = vpow.pop %v801
        %v803 = vmul.f32 %v791, 1.442695
        %v804 = vpow.pop %v803
        %v805 = vmul.f32 %v792, 1.442695
        %v806 = vpow.pop %v805
        %v807 = vmul.f32 %v793, 1.442695
        %v808 = vpow.pop %v807
        %v809 = vmul.f32 %v794, 1.442695
        %v810 = vpow.pop %v809
        %v811 = vpack.c.bf16 %v796, %v796
        %v812 = vpack.c.bf16 %v798, %v798
        %v813 = vpack.c.bf16 %v800, %v800
        %v814 = vpack.c.bf16 %v802, %v802
        %v815 = vpack.c.bf16 %v804, %v804
        %v816 = vpack.c.bf16 %v806, %v806
        %v817 = vpack.c.bf16 %v808, %v808
        %v818 = vpack.c.bf16 %v810, %v810
        %v819 = vlaneseq
        %v820 = vshrl.u32 %v819, 7
        %v821 = vsub.s32 0, %v820
        %v822 = vrot.slane %v709, %v821
        %824 = vbcast.lane.b32.xlu0 %v822, 256
        %v825 = vpop.permute.xlu0 %824
        %v826 = vlaneseq
        %v827 = vshrl.u32 %v826, 7
        %v828 = vsub.s32 1, %v827
        %v829 = vrot.slane %v709, %v828
        %831 = vbcast.lane.b32.xlu0 %v829, 256
        %v832 = vpop.permute.xlu0 %831
        %v833 = vlaneseq
        %v834 = vshrl.u32 %v833, 7
        %v835 = vsub.s32 2, %v834
        %v836 = vrot.slane %v709, %v835
        %838 = vbcast.lane.b32.xlu0 %v836, 256
        %v839 = vpop.permute.xlu0 %838
        %v840 = vlaneseq
        %v841 = vshrl.u32 %v840, 7
        %v842 = vsub.s32 3, %v841
        %v843 = vrot.slane %v709, %v842
        %845 = vbcast.lane.b32.xlu0 %v843, 256
        %v846 = vpop.permute.xlu0 %845
        %v847 = vlaneseq
        %v848 = vshrl.u32 %v847, 7
        %v849 = vsub.s32 4, %v848
        %v850 = vrot.slane %v709, %v849
        %852 = vbcast.lane.b32.xlu0 %v850, 256
        %v853 = vpop.permute.xlu0 %852
        %v854 = vlaneseq
        %v855 = vshrl.u32 %v854, 7
        %v856 = vsub.s32 5, %v855
        %v857 = vrot.slane %v709, %v856
        %859 = vbcast.lane.b32.xlu0 %v857, 256
        %v860 = vpop.permute.xlu0 %859
        %v861 = vlaneseq
        %v862 = vshrl.u32 %v861, 7
        %v863 = vsub.s32 6, %v862
        %v864 = vrot.slane %v709, %v863
        %866 = vbcast.lane.b32.xlu0 %v864, 256
        %v867 = vpop.permute.xlu0 %866
        %v868 = vlaneseq
        %v869 = vshrl.u32 %v868, 7
        %v870 = vsub.s32 7, %v869
        %v871 = vrot.slane %v709, %v870
        %873 = vbcast.lane.b32.xlu0 %v871, 256
        %v874 = vpop.permute.xlu0 %873
        %v875 = vpack.c.bf16 %v825, %v825
        %v876 = vpack.c.bf16 %v832, %v832
        %v877 = vpack.c.bf16 %v839, %v839
        %v878 = vpack.c.bf16 %v846, %v846
        %v879 = vpack.c.bf16 %v853, %v853
        %v880 = vpack.c.bf16 %v860, %v860
        %v881 = vpack.c.bf16 %v867, %v867
        %v882 = vpack.c.bf16 %v874, %v874
        %v883 = vmul.bf16 %v811, %v875
        %v884 = vmul.bf16 %v812, %v876
        %v885 = vmul.bf16 %v813, %v877
        %v886 = vmul.bf16 %v814, %v878
        %v887 = vmul.bf16 %v815, %v879
        %v888 = vmul.bf16 %v816, %v880
        %v889 = vmul.bf16 %v817, %v881
        %v890 = vmul.bf16 %v818, %v882
        %vm891 = vcmask 56320
        %v893 = vsel %vm891, %v592, 0
        %vm895 = vcmask 1042432
        %vm896 = vcmask 1043456
        %v897 = vsel %vm895, 4294967295, 65535
        %v898 = vsel %vm896, %v897, 0
        %v900 = vand.u32 %v883, %v898
        %902 = vmatprep.subr.bf16.mxu0 0
        %903 = vmatpush1.bf16.msra.mxu0 %v900
        %904 = vmatprep.subr.bf16.mxu0 0
        %905 = vmatpush1.bf16.msra.mxu0 0
        %906 = vmatprep.subr.bf16.mxu0 0
        %907 = vmatpush1.bf16.msra.mxu0 0
        %908 = vmatprep.subr.bf16.mxu0 0
        %909 = vmatpush1.bf16.msra.mxu0 0
        %910 = vmatprep.subr.bf16.mxu0 0
        %911 = vmatpush1.bf16.msra.mxu0 0
        %912 = vmatprep.subr.bf16.mxu0 0
        %913 = vmatpush1.bf16.msra.mxu0 0
        %914 = vmatprep.subr.bf16.mxu0 0
        %915 = vmatpush1.bf16.msra.mxu0 0
        %916 = vmatprep.subr.bf16.mxu0 0
        %917 = vmatpush1.bf16.msra.mxu0 0
        %918 = vmatprep.subr.bf16.mxu0 0
        %919 = vmatpush1.bf16.msra.mxu0 0
        %920 = vmatprep.subr.bf16.mxu0 0
        %921 = vmatpush1.bf16.msra.mxu0 0
        %922 = vmatprep.subr.bf16.mxu0 0
        %923 = vmatpush1.bf16.msra.mxu0 0
        %924 = vmatprep.subr.bf16.mxu0 0
        %925 = vmatpush1.bf16.msra.mxu0 0
        %926 = vmatprep.subr.bf16.mxu0 0
        %927 = vmatpush1.bf16.msra.mxu0 0
        %928 = vmatprep.subr.bf16.mxu0 0
        %929 = vmatpush1.bf16.msra.mxu0 0
        %930 = vmatprep.subr.bf16.mxu0 0
        %931 = vmatpush1.bf16.msra.mxu0 0
        %932 = vmatprep.subr.bf16.mxu0 0
        %933 = vmatpush1.bf16.msra.mxu0 0
        %934 = vmatprep.mubr.bf16.mxu0 0
        %935 = vmatmul.mubr.bf16.gmra.mrb[0].mxu0 %v893
        %v936 = vpop.f32.mrb[0].mxu0
        %v937 = vadd.f32 0.0, %v936
        %v938 = vpop.f32.mrb[0].mxu0
        %v939 = vpop.f32.mrb[0].mxu0
        %v940 = vpop.f32.mrb[0].mxu0
        %941 = vdwg.mxu0
        %v943 = vsel %vm891, %v593, 0
        %v946 = vand.u32 %v884, %v898
        %948 = vmatprep.subr.bf16.mxu0 0
        %949 = vmatpush1.bf16.msra.mxu0 %v946
        %950 = vmatprep.subr.bf16.mxu0 0
        %951 = vmatpush1.bf16.msra.mxu0 0
        %952 = vmatprep.subr.bf16.mxu0 0
        %953 = vmatpush1.bf16.msra.mxu0 0
        %954 = vmatprep.subr.bf16.mxu0 0
        %955 = vmatpush1.bf16.msra.mxu0 0
        %956 = vmatprep.subr.bf16.mxu0 0
        %957 = vmatpush1.bf16.msra.mxu0 0
        %958 = vmatprep.subr.bf16.mxu0 0
        %959 = vmatpush1.bf16.msra.mxu0 0
        %960 = vmatprep.subr.bf16.mxu0 0
        %961 = vmatpush1.bf16.msra.mxu0 0
        %962 = vmatprep.subr.bf16.mxu0 0
        %963 = vmatpush1.bf16.msra.mxu0 0
        %964 = vmatprep.subr.bf16.mxu0 0
        %965 = vmatpush1.bf16.msra.mxu0 0
        %966 = vmatprep.subr.bf16.mxu0 0
        %967 = vmatpush1.bf16.msra.mxu0 0
        %968 = vmatprep.subr.bf16.mxu0 0
        %969 = vmatpush1.bf16.msra.mxu0 0
        %970 = vmatprep.subr.bf16.mxu0 0
        %971 = vmatpush1.bf16.msra.mxu0 0
        %972 = vmatprep.subr.bf16.mxu0 0
        %973 = vmatpush1.bf16.msra.mxu0 0
        %974 = vmatprep.subr.bf16.mxu0 0
        %975 = vmatpush1.bf16.msra.mxu0 0
        %976 = vmatprep.subr.bf16.mxu0 0
        %977 = vmatpush1.bf16.msra.mxu0 0
        %978 = vmatprep.subr.bf16.mxu0 0
        %979 = vmatpush1.bf16.msra.mxu0 0
        %980 = vmatprep.mubr.bf16.mxu0 0
        %981 = vmatmul.mubr.bf16.gmra.mrb[0].mxu0 %v943
        %v982 = vpop.f32.mrb[0].mxu0
        %v983 = vadd.f32 0.0, %v982
        %v984 = vpop.f32.mrb[0].mxu0
        %v985 = vpop.f32.mrb[0].mxu0
        %v986 = vpop.f32.mrb[0].mxu0
        %987 = vdwg.mxu0
        %v989 = vsel %vm891, %v594, 0
        %v992 = vand.u32 %v885, %v898
        %994 = vmatprep.subr.bf16.mxu0 0
        %995 = vmatpush1.bf16.msra.mxu0 %v992
        %996 = vmatprep.subr.bf16.mxu0 0
        %997 = vmatpush1.bf16.msra.mxu0 0
        %998 = vmatprep.subr.bf16.mxu0 0
        %999 = vmatpush1.bf16.msra.mxu0 0
        %1000 = vmatprep.subr.bf16.mxu0 0
        %1001 = vmatpush1.bf16.msra.mxu0 0
        %1002 = vmatprep.subr.bf16.mxu0 0
        %1003 = vmatpush1.bf16.msra.mxu0 0
        %1004 = vmatprep.subr.bf16.mxu0 0
        %1005 = vmatpush1.bf16.msra.mxu0 0
        %1006 = vmatprep.subr.bf16.mxu0 0
        %1007 = vmatpush1.bf16.msra.mxu0 0
        %1008 = vmatprep.subr.bf16.mxu0 0
        %1009 = vmatpush1.bf16.msra.mxu0 0
        %1010 = vmatprep.subr.bf16.mxu0 0
        %1011 = vmatpush1.bf16.msra.mxu0 0
        %1012 = vmatprep.subr.bf16.mxu0 0
        %1013 = vmatpush1.bf16.msra.mxu0 0
        %1014 = vmatprep.subr.bf16.mxu0 0
        %1015 = vmatpush1.bf16.msra.mxu0 0
        %1016 = vmatprep.subr.bf16.mxu0 0
        %1017 = vmatpush1.bf16.msra.mxu0 0
        %1018 = vmatprep.subr.bf16.mxu0 0
        %1019 = vmatpush1.bf16.msra.mxu0 0
        %1020 = vmatprep.subr.bf16.mxu0 0
        %1021 = vmatpush1.bf16.msra.mxu0 0
        %1022 = vmatprep.subr.bf16.mxu0 0
        %1023 = vmatpush1.bf16.msra.mxu0 0
        %1024 = vmatprep.subr.bf16.mxu0 0
        %1025 = vmatpush1.bf16.msra.mxu0 0
        %1026 = vmatprep.mubr.bf16.mxu0 0
        %1027 = vmatmul.mubr.bf16.gmra.mrb[0].mxu0 %v989
        %v1028 = vpop.f32.mrb[0].mxu0
        %v1029 = vadd.f32 0.0, %v1028
        %v1030 = vpop.f32.mrb[0].mxu0
        %v1031 = vpop.f32.mrb[0].mxu0
        %v1032 = vpop.f32.mrb[0].mxu0
        %1033 = vdwg.mxu0
        %v1035 = vsel %vm891, %v595, 0
        %v1038 = vand.u32 %v886, %v898
        %1040 = vmatprep.subr.bf16.mxu0 0
        %1041 = vmatpush1.bf16.msra.mxu0 %v1038
        %1042 = vmatprep.subr.bf16.mxu0 0
        %1043 = vmatpush1.bf16.msra.mxu0 0
        %1044 = vmatprep.subr.bf16.mxu0 0
        %1045 = vmatpush1.bf16.msra.mxu0 0
        %1046 = vmatprep.subr.bf16.mxu0 0
        %1047 = vmatpush1.bf16.msra.mxu0 0
        %1048 = vmatprep.subr.bf16.mxu0 0
        %1049 = vmatpush1.bf16.msra.mxu0 0
        %1050 = vmatprep.subr.bf16.mxu0 0
        %1051 = vmatpush1.bf16.msra.mxu0 0
        %1052 = vmatprep.subr.bf16.mxu0 0
        %1053 = vmatpush1.bf16.msra.mxu0 0
        %1054 = vmatprep.subr.bf16.mxu0 0
        %1055 = vmatpush1.bf16.msra.mxu0 0
        %1056 = vmatprep.subr.bf16.mxu0 0
        %1057 = vmatpush1.bf16.msra.mxu0 0
        %1058 = vmatprep.subr.bf16.mxu0 0
        %1059 = vmatpush1.bf16.msra.mxu0 0
        %1060 = vmatprep.subr.bf16.mxu0 0
        %1061 = vmatpush1.bf16.msra.mxu0 0
        %1062 = vmatprep.subr.bf16.mxu0 0
        %1063 = vmatpush1.bf16.msra.mxu0 0
        %1064 = vmatprep.subr.bf16.mxu0 0
        %1065 = vmatpush1.bf16.msra.mxu0 0
        %1066 = vmatprep.subr.bf16.mxu0 0
        %1067 = vmatpush1.bf16.msra.mxu0 0
        %1068 = vmatprep.subr.bf16.mxu0 0
        %1069 = vmatpush1.bf16.msra.mxu0 0
        %1070 = vmatprep.subr.bf16.mxu0 0
        %1071 = vmatpush1.bf16.msra.mxu0 0
        %1072 = vmatprep.mubr.bf16.mxu0 0
        %1073 = vmatmul.mubr.bf16.gmra.mrb[0].mxu0 %v1035
        %v1074 = vpop.f32.mrb[0].mxu0
        %v1075 = vadd.f32 0.0, %v1074
        %v1076 = vpop.f32.mrb[0].mxu0
        %v1077 = vpop.f32.mrb[0].mxu0
        %v1078 = vpop.f32.mrb[0].mxu0
        %1079 = vdwg.mxu0
        %v1081 = vsel %vm891, %v596, 0
        %v1084 = vand.u32 %v887, %v898
        %1086 = vmatprep.subr.bf16.mxu0 0
        %1087 = vmatpush1.bf16.msra.mxu0 %v1084
        %1088 = vmatprep.subr.bf16.mxu0 0
        %1089 = vmatpush1.bf16.msra.mxu0 0
        %1090 = vmatprep.subr.bf16.mxu0 0
        %1091 = vmatpush1.bf16.msra.mxu0 0
        %1092 = vmatprep.subr.bf16.mxu0 0
        %1093 = vmatpush1.bf16.msra.mxu0 0
        %1094 = vmatprep.subr.bf16.mxu0 0
        %1095 = vmatpush1.bf16.msra.mxu0 0
        %1096 = vmatprep.subr.bf16.mxu0 0
        %1097 = vmatpush1.bf16.msra.mxu0 0
        %1098 = vmatprep.subr.bf16.mxu0 0
        %1099 = vmatpush1.bf16.msra.mxu0 0
        %1100 = vmatprep.subr.bf16.mxu0 0
        %1101 = vmatpush1.bf16.msra.mxu0 0
        %1102 = vmatprep.subr.bf16.mxu0 0
        %1103 = vmatpush1.bf16.msra.mxu0 0
        %1104 = vmatprep.subr.bf16.mxu0 0
        %1105 = vmatpush1.bf16.msra.mxu0 0
        %1106 = vmatprep.subr.bf16.mxu0 0
        %1107 = vmatpush1.bf16.msra.mxu0 0
        %1108 = vmatprep.subr.bf16.mxu0 0
        %1109 = vmatpush1.bf16.msra.mxu0 0
        %1110 = vmatprep.subr.bf16.mxu0 0
        %1111 = vmatpush1.bf16.msra.mxu0 0
        %1112 = vmatprep.subr.bf16.mxu0 0
        %1113 = vmatpush1.bf16.msra.mxu0 0
        %1114 = vmatprep.subr.bf16.mxu0 0
        %1115 = vmatpush1.bf16.msra.mxu0 0
        %1116 = vmatprep.subr.bf16.mxu0 0
        %1117 = vmatpush1.bf16.msra.mxu0 0
        %1118 = vmatprep.mubr.bf16.mxu0 0
        %1119 = vmatmul.mubr.bf16.gmra.mrb[0].mxu0 %v1081
        %v1120 = vpop.f32.mrb[0].mxu0
        %v1121 = vadd.f32 0.0, %v1120
        %v1122 = vpop.f32.mrb[0].mxu0
        %v1123 = vpop.f32.mrb[0].mxu0
        %v1124 = vpop.f32.mrb[0].mxu0
        %1125 = vdwg.mxu0
        %v1127 = vsel %vm891, %v597, 0
        %v1130 = vand.u32 %v888, %v898
        %1132 = vmatprep.subr.bf16.mxu0 0
        %1133 = vmatpush1.bf16.msra.mxu0 %v1130
        %1134 = vmatprep.subr.bf16.mxu0 0
        %1135 = vmatpush1.bf16.msra.mxu0 0
        %1136 = vmatprep.subr.bf16.mxu0 0
        %1137 = vmatpush1.bf16.msra.mxu0 0
        %1138 = vmatprep.subr.bf16.mxu0 0
        %1139 = vmatpush1.bf16.msra.mxu0 0
        %1140 = vmatprep.subr.bf16.mxu0 0
        %1141 = vmatpush1.bf16.msra.mxu0 0
        %1142 = vmatprep.subr.bf16.mxu0 0
        %1143 = vmatpush1.bf16.msra.mxu0 0
        %1144 = vmatprep.subr.bf16.mxu0 0
        %1145 = vmatpush1.bf16.msra.mxu0 0
        %1146 = vmatprep.subr.bf16.mxu0 0
        %1147 = vmatpush1.bf16.msra.mxu0 0
        %1148 = vmatprep.subr.bf16.mxu0 0
        %1149 = vmatpush1.bf16.msra.mxu0 0
        %1150 = vmatprep.subr.bf16.mxu0 0
        %1151 = vmatpush1.bf16.msra.mxu0 0
        %1152 = vmatprep.subr.bf16.mxu0 0
        %1153 = vmatpush1.bf16.msra.mxu0 0
        %1154 = vmatprep.subr.bf16.mxu0 0
        %1155 = vmatpush1.bf16.msra.mxu0 0
        %1156 = vmatprep.subr.bf16.mxu0 0
        %1157 = vmatpush1.bf16.msra.mxu0 0
        %1158 = vmatprep.subr.bf16.mxu0 0
        %1159 = vmatpush1.bf16.msra.mxu0 0
        %1160 = vmatprep.subr.bf16.mxu0 0
        %1161 = vmatpush1.bf16.msra.mxu0 0
        %1162 = vmatprep.subr.bf16.mxu0 0
        %1163 = vmatpush1.bf16.msra.mxu0 0
        %1164 = vmatprep.mubr.bf16.mxu0 0
        %1165 = vmatmul.mubr.bf16.gmra.mrb[0].mxu0 %v1127
        %v1166 = vpop.f32.mrb[0].mxu0
        %v1167 = vadd.f32 0.0, %v1166
        %v1168 = vpop.f32.mrb[0].mxu0
        %v1169 = vpop.f32.mrb[0].mxu0
        %v1170 = vpop.f32.mrb[0].mxu0
        %1171 = vdwg.mxu0
        %v1173 = vsel %vm891, %v598, 0
        %v1176 = vand.u32 %v889, %v898
        %1178 = vmatprep.subr.bf16.mxu0 0
        %1179 = vmatpush1.bf16.msra.mxu0 %v1176
        %1180 = vmatprep.subr.bf16.mxu0 0
        %1181 = vmatpush1.bf16.msra.mxu0 0
        %1182 = vmatprep.subr.bf16.mxu0 0
        %1183 = vmatpush1.bf16.msra.mxu0 0
        %1184 = vmatprep.subr.bf16.mxu0 0
        %1185 = vmatpush1.bf16.msra.mxu0 0
        %1186 = vmatprep.subr.bf16.mxu0 0
        %1187 = vmatpush1.bf16.msra.mxu0 0
        %1188 = vmatprep.subr.bf16.mxu0 0
        %1189 = vmatpush1.bf16.msra.mxu0 0
        %1190 = vmatprep.subr.bf16.mxu0 0
        %1191 = vmatpush1.bf16.msra.mxu0 0
        %1192 = vmatprep.subr.bf16.mxu0 0
        %1193 = vmatpush1.bf16.msra.mxu0 0
        %1194 = vmatprep.subr.bf16.mxu0 0
        %1195 = vmatpush1.bf16.msra.mxu0 0
        %1196 = vmatprep.subr.bf16.mxu0 0
        %1197 = vmatpush1.bf16.msra.mxu0 0
        %1198 = vmatprep.subr.bf16.mxu0 0
        %1199 = vmatpush1.bf16.msra.mxu0 0
        %1200 = vmatprep.subr.bf16.mxu0 0
        %1201 = vmatpush1.bf16.msra.mxu0 0
        %1202 = vmatprep.subr.bf16.mxu0 0
        %1203 = vmatpush1.bf16.msra.mxu0 0
        %1204 = vmatprep.subr.bf16.mxu0 0
        %1205 = vmatpush1.bf16.msra.mxu0 0
        %1206 = vmatprep.subr.bf16.mxu0 0
        %1207 = vmatpush1.bf16.msra.mxu0 0
        %1208 = vmatprep.subr.bf16.mxu0 0
        %1209 = vmatpush1.bf16.msra.mxu0 0
        %1210 = vmatprep.mubr.bf16.mxu0 0
        %1211 = vmatmul.mubr.bf16.gmra.mrb[0].mxu0 %v1173
        %v1212 = vpop.f32.mrb[0].mxu0
        %v1213 = vadd.f32 0.0, %v1212
        %v1214 = vpop.f32.mrb[0].mxu0
        %v1215 = vpop.f32.mrb[0].mxu0
        %v1216 = vpop.f32.mrb[0].mxu0
        %1217 = vdwg.mxu0
        %v1219 = vsel %vm891, %v599, 0
        %v1222 = vand.u32 %v890, %v898
        %1224 = vmatprep.subr.bf16.mxu0 0
        %1225 = vmatpush1.bf16.msra.mxu0 %v1222
        %1226 = vmatprep.subr.bf16.mxu0 0
        %1227 = vmatpush1.bf16.msra.mxu0 0
        %1228 = vmatprep.subr.bf16.mxu0 0
        %1229 = vmatpush1.bf16.msra.mxu0 0
        %1230 = vmatprep.subr.bf16.mxu0 0
        %1231 = vmatpush1.bf16.msra.mxu0 0
        %1232 = vmatprep.subr.bf16.mxu0 0
        %1233 = vmatpush1.bf16.msra.mxu0 0
        %1234 = vmatprep.subr.bf16.mxu0 0
        %1235 = vmatpush1.bf16.msra.mxu0 0
        %1236 = vmatprep.subr.bf16.mxu0 0
        %1237 = vmatpush1.bf16.msra.mxu0 0
        %1238 = vmatprep.subr.bf16.mxu0 0
        %1239 = vmatpush1.bf16.msra.mxu0 0
        %1240 = vmatprep.subr.bf16.mxu0 0
        %1241 = vmatpush1.bf16.msra.mxu0 0
        %1242 = vmatprep.subr.bf16.mxu0 0
        %1243 = vmatpush1.bf16.msra.mxu0 0
        %1244 = vmatprep.subr.bf16.mxu0 0
        %1245 = vmatpush1.bf16.msra.mxu0 0
        %1246 = vmatprep.subr.bf16.mxu0 0
        %1247 = vmatpush1.bf16.msra.mxu0 0
        %1248 = vmatprep.subr.bf16.mxu0 0
        %1249 = vmatpush1.bf16.msra.mxu0 0
        %1250 = vmatprep.subr.bf16.mxu0 0
        %1251 = vmatpush1.bf16.msra.mxu0 0
        %1252 = vmatprep.subr.bf16.mxu0 0
        %1253 = vmatpush1.bf16.msra.mxu0 0
        %1254 = vmatprep.subr.bf16.mxu0 0
        %1255 = vmatpush1.bf16.msra.mxu0 0
        %1256 = vmatprep.mubr.bf16.mxu0 0
        %1257 = vmatmul.mubr.bf16.gmra.mrb[0].mxu0 %v1219
        %v1258 = vpop.f32.mrb[0].mxu0
        %v1259 = vadd.f32 0.0, %v1258
        %v1260 = vpop.f32.mrb[0].mxu0
        %v1261 = vpop.f32.mrb[0].mxu0
        %v1262 = vpop.f32.mrb[0].mxu0
        %1263 = vdwg.mxu0
        %vm1264 = vcmask 348160
        %1265 = vst.msk [vmem:[%s567] sm:$0x1f] %vm1264, %v937
        %1266 = vst.msk [vmem:[%s567 + $0x8] sm:$0x1f] %vm1264, %v983
        %1267 = vst.msk [vmem:[%s567 + $0x10] sm:$0x1f] %vm1264, %v1029
        %1268 = vst.msk [vmem:[%s567 + $0x18] sm:$0x1f] %vm1264, %v1075
        %1269 = vst.msk [vmem:[%s567 + $0x20] sm:$0x1f] %vm1264, %v1121
        %1270 = vst.msk [vmem:[%s567 + $0x28] sm:$0x1f] %vm1264, %v1167
        %1271 = vst.msk [vmem:[%s567 + $0x30] sm:$0x1f] %vm1264, %v1213
        %1272 = vst.msk [vmem:[%s567 + $0x38] sm:$0x1f] %vm1264, %v1259
        %v1273 = vrcp.pop %v591
        %1274 = vst.msk [vmem:[%s585] sm:$0xff] %vm891, %v1273
        %vm1275 = vcmask 167936
        %1276 = vst.msk [vmem:[#allocation2] sm:$0x1f] %vm1275, 0.0
        %1277 = vst.msk [vmem:[#allocation2 + $0x8] sm:$0x1f] %vm1275, 0.0
        %1278 = vst.msk [vmem:[#allocation2 + $0x10] sm:$0x1f] %vm1275, 0.0
        %1279 = vst.msk [vmem:[#allocation2 + $0x18] sm:$0x1f] %vm1275, 0.0
        %1280 = vst.msk [vmem:[#allocation2 + $0x20] sm:$0x1f] %vm1275, 0.0
        %1281 = vst.msk [vmem:[#allocation2 + $0x28] sm:$0x1f] %vm1275, 0.0
        %1282 = vst.msk [vmem:[#allocation2 + $0x30] sm:$0x1f] %vm1275, 0.0
        %1283 = vst.msk [vmem:[#allocation2 + $0x38] sm:$0x1f] %vm1275, 0.0
      $region48: #{tpu_custom_call.1} parent=43 // pred_fallthru
        _
      %v1284 = vld [vmem:[%s525] sm:$0xff]
      %v1285 = vld [vmem:[%s535] sm:$0xff]
      %v1286 = vld [vmem:[%s545] sm:$0xff]
      %v1287 = vld [vmem:[%s557] sm:$0x7]
      %v1288 = vld [vmem:[%s557 + $0x4] sm:$0x7]
      %v1289 = vld [vmem:[%s557 + $0x8] sm:$0x7]
      %v1290 = vld [vmem:[%s557 + $0xc] sm:$0x7]
      %v1291 = vld [vmem:[%s557 + $0x10] sm:$0x7]
      %v1292 = vld [vmem:[%s557 + $0x14] sm:$0x7]
      %v1293 = vld [vmem:[%s557 + $0x18] sm:$0x7]
      %v1294 = vld [vmem:[%s557 + $0x1c] sm:$0x7]
      %v1295 = vmul.f32 %v1284, 2.0
      %v1296 = vmul.f32 %v1295, %v1285
      %vm1297 = vcmp.gt.f32.partialorder %v1296, 1e-12
      %v1298 = vsel %vm1297, %v1296, 1.0
      %v1299 = vmul.f32 %v1284, %v1284
      %v1300 = vmul.f32 %v1285, %v1285
      %v1301 = vadd.f32 %v1299, %v1300
      %v1302 = vmul.f32 %v1286, %v1286
      %v1303 = vsub.f32 %v1301, %v1302
      %v1304 = vrcp.pop %v1298
      %v1305 = vmul.f32 %v1303, %v1304
      %v1306 = vmul.f32 %v1284, 0.3926991
      %v1307 = vand.u32 2147483647, %v1306
      %vm1308 = vcmp.le.f32.partialorder %v1307, 0.7853982
      %vm1309 = vcmp.lt.s32.totalorder %v1306, 0
      %v1310 = vand.u32 %v1306, 2139095040
      %v1311 = vshrl.u32 %v1310, 23
      %v1312 = vsub.s32 %v1311, 127
      %v1313 = vand.u32 2147483647, %v1306
      %v1314 = vand.u32 %v1313, 8388607
      %v1315 = vor.u32 %v1314, 8388608
      %v1316 = vsub.s32 0, %v1315
      %v1317 = vadd.s32 %v1312, 1
      %vm1318 = vcmp.gt.s32.totalorder %v1317, 0
      %v1319 = vsel %vm1318, %v1317, 0
      %v1320 = vshrl.u32 %v1319, 5
      %v1321 = vand.u32 %v1319, 31
      %v1322 = vsub.s32 32, %v1321
      %v1323 = vshrl.u32 683565275, %v1322
      %v1324 = vshll.u32 683565275, %v1321
      %v1325 = vshrl.u32 2475754826, %v1322
      %v1326 = vor.u32 %v1324, %v1325
      %v1327 = vshll.u32 2475754826, %v1321
      %v1328 = vshrl.u32 2131351028, %v1322
      %v1329 = vor.u32 %v1327, %v1328
      %v1330 = vshll.u32 2131351028, %v1321
      %v1331 = vshrl.u32 2102212464, %v1322
      %v1332 = vor.u32 %v1330, %v1331
      %v1333 = vshll.u32 2102212464, %v1321
      %v1334 = vshrl.u32 920167782, %v1322
      %v1335 = vor.u32 %v1333, %v1334
      %v1336 = vshll.u32 920167782, %v1321
      %v1337 = vshrl.u32 1326507024, %v1322
      %v1338 = vor.u32 %v1336, %v1337
      %vm1339 = vcmp.lt.s32.totalorder %v1320, 1
      %vm1340 = vcmp.lt.s32.totalorder %v1320, 2
      %vm1341 = vcmp.lt.s32.totalorder %v1320, 3
      %vm1342 = vcmp.lt.s32.totalorder %v1320, 4
      %v1343 = vsel %vm1339, %v1323, %v1326
      %v1344 = vsel %vm1342, %v1332, 2102212464
      %v1345 = vsel %vm1341, %v1329, %v1344
      %v1346 = vsel %vm1340, %v1343, %v1345
      %v1347 = vsel %vm1339, %v1326, %v1329
      %v1348 = vsel %vm1342, %v1335, 920167782
      %v1349 = vsel %vm1341, %v1332, %v1348
      %v1350 = vsel %vm1340, %v1347, %v1349
      %v1351 = vsel %vm1339, %v1329, %v1332
      %v1352 = vsel %vm1342, %v1338, 1326507024
      %v1353 = vsel %vm1341, %v1335, %v1352
      %v1354 = vsel %vm1340, %v1351, %v1353
      %v1355 = vshll.u32 %v1315, 8
      %v1356 = vmul.u32.u64.compose %v1355, %v1354
      %v1357 = vextract.low.u32 %v1356
      %v1358 = vextract.high.u32 %v1356
      %v1359 = vmul.u32.u64.compose %v1355, %v1350
      %v1360 = vextract.low.u32 %v1359
      %v1361 = vextract.high.u32 %v1359
      %v1362 = vmul.u32 %v1355, %v1346
      %v1363 = vadd.s32 %v1358, %v1360
      %vm1364 = vc.u32 %v1358, %v1360
      %v1365 = vadd.s32 %v1361, 1
      %v1366 = vsel %vm1364, %v1365, %v1361
      %v1367 = vadd.s32 %v1362, %v1366
      %v1368 = vadd.s32 %v1367, 536870912
      %v1369 = vshrl.u32 %v1368, 30
      %v1370 = vshll.u32 %v1369, 30
      %v1371 = vsub.s32 %v1367, %v1370
      %vm1372 = vcmp.lt.s32.totalorder %v1371, 0
      %v1373 = vsub.s32 0, %v1371
      %v1374 = vsel %vm1372, %v1373, %v1371
      %v1375 = vclz %v1374
      %v1376 = vsub.s32 %v1375, 2
      %vm1377 = vcmp.gt.s32.totalorder 0, %v1376
      %v1378 = vsel %vm1377, 0, %v1376
      %v1379 = vsub.s32 32, %v1378
      %v1380 = vshll.u32 %v1371, %v1378
      %v1381 = vshrl.u32 %v1363, %v1379
      %v1382 = vor.u32 %v1380, %v1381
      %v1383 = vsub.s32 4294967266, %v1378
      %v1384 = vadd.s32 %v1383, 127
      %v1385 = vshll.u32 %v1384, 23
      %v1386 = vor.u32 4788187, %v1385
      %v1387 = vand.u32 2147483647, %v1386
      %v1389 = vcvt.s32.f32 %v1382
      %v1390 = vmul.f32 %v1389, %v1387
      %v1391 = vxor.u32 %v1390, 2147483648
      %v1392 = vsel %vm1309, %v1391, %v1390
      %v1393 = vsub.s32 4, %v1369
      %v1394 = vsel %vm1309, %v1393, %v1369
      %v1395 = vsel %vm1308, %v1306, %v1392
      %v1396 = vsel %vm1308, 0, %v1394
      %v1397 = vcosq.f32.pop %v1395
      %v1398 = vsinq.f32.pop %v1395
      %vm1399 = vweird.f32 %v1306
      %v1400 = vand.u32 %v1396, 3
      %vm1401 = vcmp.lt.s32.totalorder %v1400, 2
      %vm1402 = vcmp.eq.s32.totalorder %v1400, 0
      %v1403 = vxor.u32 %v1398, 2147483648
      %v1404 = vsel %vm1402, %v1397, %v1403
      %vm1405 = vcmp.eq.s32.totalorder %v1400, 2
      %v1406 = vxor.u32 %v1397, 2147483648
      %v1407 = vsel %vm1405, %v1406, %v1398
      %v1408 = vsel %vm1401, %v1404, %v1407
      %v1409 = vsel %vm1399, nan, %v1408
      %v1410 = vadd.f32 %v1409, 1.0
      %v1411 = vmul.f32 %v1410, 0.5
      %vm1412 = vcmp.lt.f32.partialorder %v1284, 8.0
      %v1413 = vsel %vm1412, 1, 0
      %v1414 = vcvt.s32.f32 %v1413
      %v1415 = vmul.f32 %v1411, %v1414
      %v1416 = vmul.f32 %v1285, 0.3926991
      %v1417 = vand.u32 2147483647, %v1416
      %vm1418 = vcmp.le.f32.partialorder %v1417, 0.7853982
      %vm1419 = vcmp.lt.s32.totalorder %v1416, 0
      %v1420 = vand.u32 %v1416, 2139095040
      %v1421 = vshrl.u32 %v1420, 23
      %v1422 = vsub.s32 %v1421, 127
      %v1423 = vand.u32 2147483647, %v1416
      %v1424 = vand.u32 %v1423, 8388607
      %v1425 = vor.u32 %v1424, 8388608
      %v1426 = vsub.s32 0, %v1425
      %v1427 = vadd.s32 %v1422, 1
      %vm1428 = vcmp.gt.s32.totalorder %v1427, 0
      %v1429 = vsel %vm1428, %v1427, 0
      %v1430 = vshrl.u32 %v1429, 5
      %v1431 = vand.u32 %v1429, 31
      %v1432 = vsub.s32 32, %v1431
      %v1433 = vshrl.u32 683565275, %v1432
      %v1434 = vshll.u32 683565275, %v1431
      %v1435 = vshrl.u32 2475754826, %v1432
      %v1436 = vor.u32 %v1434, %v1435
      %v1437 = vshll.u32 2475754826, %v1431
      %v1438 = vshrl.u32 2131351028, %v1432
      %v1439 = vor.u32 %v1437, %v1438
      %v1440 = vshll.u32 2131351028, %v1431
      %v1441 = vshrl.u32 2102212464, %v1432
      %v1442 = vor.u32 %v1440, %v1441
      %v1443 = vshll.u32 2102212464, %v1431
      %v1444 = vshrl.u32 920167782, %v1432
      %v1445 = vor.u32 %v1443, %v1444
      %v1446 = vshll.u32 920167782, %v1431
      %v1447 = vshrl.u32 1326507024, %v1432
      %v1448 = vor.u32 %v1446, %v1447
      %vm1449 = vcmp.lt.s32.totalorder %v1430, 1
      %vm1450 = vcmp.lt.s32.totalorder %v1430, 2
      %vm1451 = vcmp.lt.s32.totalorder %v1430, 3
      %vm1452 = vcmp.lt.s32.totalorder %v1430, 4
      %v1453 = vsel %vm1449, %v1433, %v1436
      %v1454 = vsel %vm1452, %v1442, 2102212464
      %v1455 = vsel %vm1451, %v1439, %v1454
      %v1456 = vsel %vm1450, %v1453, %v1455
      %v1457 = vsel %vm1449, %v1436, %v1439
      %v1458 = vsel %vm1452, %v1445, 920167782
      %v1459 = vsel %vm1451, %v1442, %v1458
      %v1460 = vsel %vm1450, %v1457, %v1459
      %v1461 = vsel %vm1449, %v1439, %v1442
      %v1462 = vsel %vm1452, %v1448, 1326507024
      %v1463 = vsel %vm1451, %v1445, %v1462
      %v1464 = vsel %vm1450, %v1461, %v1463
      %v1465 = vshll.u32 %v1425, 8
      %v1466 = vmul.u32.u64.compose %v1465, %v1464
      %v1467 = vextract.low.u32 %v1466
      %v1468 = vextract.high.u32 %v1466
      %v1469 = vmul.u32.u64.compose %v1465, %v1460
      %v1470 = vextract.low.u32 %v1469
      %v1471 = vextract.high.u32 %v1469
      %v1472 = vmul.u32 %v1465, %v1456
      %v1473 = vadd.s32 %v1468, %v1470
      %vm1474 = vc.u32 %v1468, %v1470
      %v1475 = vadd.s32 %v1471, 1
      %v1476 = vsel %vm1474, %v1475, %v1471
      %v1477 = vadd.s32 %v1472, %v1476
      %v1478 = vadd.s32 %v1477, 536870912
      %v1479 = vshrl.u32 %v1478, 30
      %v1480 = vshll.u32 %v1479, 30
      %v1481 = vsub.s32 %v1477, %v1480
      %vm1482 = vcmp.lt.s32.totalorder %v1481, 0
      %v1483 = vsub.s32 0, %v1481
      %v1484 = vsel %vm1482, %v1483, %v1481
      %v1485 = vclz %v1484
      %v1486 = vsub.s32 %v1485, 2
      %vm1487 = vcmp.gt.s32.totalorder 0, %v1486
      %v1488 = vsel %vm1487, 0, %v1486
      %v1489 = vsub.s32 32, %v1488
      %v1490 = vshll.u32 %v1481, %v1488
      %v1491 = vshrl.u32 %v1473, %v1489
      %v1492 = vor.u32 %v1490, %v1491
      %v1493 = vsub.s32 4294967266, %v1488
      %v1494 = vadd.s32 %v1493, 127
      %v1495 = vshll.u32 %v1494, 23
      %v1496 = vor.u32 4788187, %v1495
      %v1497 = vand.u32 2147483647, %v1496
      %v1499 = vcvt.s32.f32 %v1492
      %v1500 = vmul.f32 %v1499, %v1497
      %v1501 = vxor.u32 %v1500, 2147483648
      %v1502 = vsel %vm1419, %v1501, %v1500
      %v1503 = vsub.s32 4, %v1479
      %v1504 = vsel %vm1419, %v1503, %v1479
      %v1505 = vsel %vm1418, %v1416, %v1502
      %v1506 = vsel %vm1418, 0, %v1504
      %v1507 = vcosq.f32.pop %v1505
      %v1508 = vsinq.f32.pop %v1505
      %vm1509 = vweird.f32 %v1416
      %v1510 = vand.u32 %v1506, 3
      %vm1511 = vcmp.lt.s32.totalorder %v1510, 2
      %vm1512 = vcmp.eq.s32.totalorder %v1510, 0
      %v1513 = vxor.u32 %v1508, 2147483648
      %v1514 = vsel %vm1512, %v1507, %v1513
      %vm1515 = vcmp.eq.s32.totalorder %v1510, 2
      %v1516 = vxor.u32 %v1507, 2147483648
      %v1517 = vsel %vm1515, %v1516, %v1508
      %v1518 = vsel %vm1511, %v1514, %v1517
      %v1519 = vsel %vm1509, nan, %v1518
      %v1520 = vadd.f32 %v1519, 1.0
      %v1521 = vmul.f32 %v1520, 0.5
      %vm1522 = vcmp.lt.f32.partialorder %v1285, 8.0
      %v1523 = vsel %vm1522, 1, 0
      %v1524 = vcvt.s32.f32 %v1523
      %v1525 = vmul.f32 %v1521, %v1524
      %v1526 = vmul.f32 %v1415, %v1525
      %v1527 = vld [vmem:[#allocation2] sm:$0x1f]
      %v1528 = vld [vmem:[#allocation2 + $0x8] sm:$0x1f]
      %v1529 = vld [vmem:[#allocation2 + $0x10] sm:$0x1f]
      %v1530 = vld [vmem:[#allocation2 + $0x18] sm:$0x1f]
      %v1531 = vld [vmem:[#allocation2 + $0x20] sm:$0x1f]
      %v1532 = vld [vmem:[#allocation2 + $0x28] sm:$0x1f]
      %v1533 = vld [vmem:[#allocation2 + $0x30] sm:$0x1f]
      %v1534 = vld [vmem:[#allocation2 + $0x38] sm:$0x1f]
      %v1535 = vlaneseq
      %v1536 = vshrl.u32 %v1535, 7
      %v1537 = vadd.s32 %v1536, 8
      %v1538 = vadd.s32 %v1536, 16
      %v1539 = vcvt.s32.f32 %v1536
      %v1540 = vcvt.s32.f32 %v1537
      %v1541 = vcvt.s32.f32 %v1538
      %v1542 = vmul.f32 %v1539, 0.1
      %v1543 = vmul.f32 %v1540, 0.1
      %v1544 = vmul.f32 %v1541, 0.1
      %v1545 = vadd.f32 %v1542, -1.0
      %v1546 = vadd.f32 %v1543, -1.0
      %v1547 = vadd.f32 %v1544, -1.0
      %v1549 = vcombine.high %v1305, %v1305
      %v1551 = vunpack.c.l.s4 1966171168
      %v1552 = vunpack.c.0.s8 %v1551
      %v1553 = vlaneseq
      %v1554 = vshrl.u32 %v1553, 7
      %v1555 = vsub.s32 %v1552, %v1554
      %v1556 = vrot.slane %v1305, %v1555
      %v1558 = vunpack.c.l.s4 1966171168
      %v1559 = vunpack.c.0.s8 %v1558
      %v1560 = vlaneseq
      %v1561 = vshrl.u32 %v1560, 7
      %v1562 = vsub.s32 %v1559, %v1561
      %v1563 = vrot.slane %v1549, %v1562
      %v1564 = vcombine.high %v1556, %v1556
      %v1565 = vcombine.high %v1563, %v1563
      %v1567 = vunpack.c.l.s4 1966171168
      %v1568 = vunpack.c.0.s8 %v1567
      %v1569 = vlaneseq
      %v1570 = vshrl.u32 %v1569, 7
      %v1571 = vsub.s32 %v1568, %v1570
      %v1572 = vrot.slane %v1556, %v1571
      %v1574 = vunpack.c.l.s4 1966171168
      %v1575 = vunpack.c.0.s8 %v1574
      %v1576 = vlaneseq
      %v1577 = vshrl.u32 %v1576, 7
      %v1578 = vsub.s32 %v1575, %v1577
      %v1579 = vrot.slane %v1563, %v1578
      %v1581 = vunpack.c.l.s4 1966171168
      %v1582 = vunpack.c.0.s8 %v1581
      %v1583 = vlaneseq
      %v1584 = vshrl.u32 %v1583, 7
      %v1585 = vsub.s32 %v1582, %v1584
      %v1586 = vrot.slane %v1564, %v1585
      %v1588 = vunpack.c.l.s4 1966171168
      %v1589 = vunpack.c.0.s8 %v1588
      %v1590 = vlaneseq
      %v1591 = vshrl.u32 %v1590, 7
      %v1592 = vsub.s32 %v1589, %v1591
      %v1593 = vrot.slane %v1565, %v1592
      %v1594 = vcombine.high %v1572, %v1572
      %v1595 = vcombine.high %v1579, %v1579
      %v1596 = vcombine.high %v1586, %v1586
      %v1597 = vcombine.high %v1593, %v1593
      %v1598 = vlaneseq
      %v1599 = vshrl.u32 %v1598, 7
      %v1600 = vsub.s32 0, %v1599
      %v1601 = vrot.slane %v1572, %v1600
      %v1602 = vlaneseq
      %v1603 = vshrl.u32 %v1602, 7
      %v1604 = vsub.s32 0, %v1603
      %v1605 = vrot.slane %v1586, %v1604
      %v1606 = vlaneseq
      %v1607 = vshrl.u32 %v1606, 7
      %v1608 = vsub.s32 0, %v1607
      %v1609 = vrot.slane %v1594, %v1608
      %v1610 = vlaneseq
      %v1611 = vshrl.u32 %v1610, 7
      %v1612 = vsub.s32 0, %v1611
      %v1613 = vrot.slane %v1596, %v1612
      %v1614 = vlaneseq
      %v1615 = vshrl.u32 %v1614, 7
      %v1616 = vsub.s32 0, %v1615
      %v1617 = vrot.slane %v1579, %v1616
      %v1618 = vlaneseq
      %v1619 = vshrl.u32 %v1618, 7
      %v1620 = vsub.s32 0, %v1619
      %v1621 = vrot.slane %v1593, %v1620
      %v1622 = vlaneseq
      %v1623 = vshrl.u32 %v1622, 7
      %v1624 = vsub.s32 0, %v1623
      %v1625 = vrot.slane %v1595, %v1624
      %v1626 = vlaneseq
      %v1627 = vshrl.u32 %v1626, 7
      %v1628 = vsub.s32 0, %v1627
      %v1629 = vrot.slane %v1597, %v1628
      %v1638 = vsub.f32 %v1601, %v1545
      %v1639 = vsub.f32 %v1601, %v1546
      %v1640 = vsub.f32 %v1601, %v1547
      %v1641 = vsub.f32 %v1605, %v1545
      %v1642 = vsub.f32 %v1605, %v1546
      %v1643 = vsub.f32 %v1605, %v1547
      %v1644 = vsub.f32 %v1609, %v1545
      %v1645 = vsub.f32 %v1609, %v1546
      %v1646 = vsub.f32 %v1609, %v1547
      %v1647 = vsub.f32 %v1613, %v1545
      %v1648 = vsub.f32 %v1613, %v1546
      %v1649 = vsub.f32 %v1613, %v1547
      %v1650 = vsub.f32 %v1617, %v1545
      %v1651 = vsub.f32 %v1617, %v1546
      %v1652 = vsub.f32 %v1617, %v1547
      %v1653 = vsub.f32 %v1621, %v1545
      %v1654 = vsub.f32 %v1621, %v1546
      %v1655 = vsub.f32 %v1621, %v1547
      %v1656 = vsub.f32 %v1625, %v1545
      %v1657 = vsub.f32 %v1625, %v1546
      %v1658 = vsub.f32 %v1625, %v1547
      %v1659 = vsub.f32 %v1629, %v1545
      %v1660 = vsub.f32 %v1629, %v1546
      %v1661 = vsub.f32 %v1629, %v1547
      %v1662 = vmul.f32 %v1638, %v1638
      %v1663 = vmul.f32 %v1639, %v1639
      %v1664 = vmul.f32 %v1640, %v1640
      %v1665 = vmul.f32 %v1641, %v1641
      %v1666 = vmul.f32 %v1642, %v1642
      %v1667 = vmul.f32 %v1643, %v1643
      %v1668 = vmul.f32 %v1644, %v1644
      %v1669 = vmul.f32 %v1645, %v1645
      %v1670 = vmul.f32 %v1646, %v1646
      %v1671 = vmul.f32 %v1647, %v1647
      %v1672 = vmul.f32 %v1648, %v1648
      %v1673 = vmul.f32 %v1649, %v1649
      %v1674 = vmul.f32 %v1650, %v1650
      %v1675 = vmul.f32 %v1651, %v1651
      %v1676 = vmul.f32 %v1652, %v1652
      %v1677 = vmul.f32 %v1653, %v1653
      %v1678 = vmul.f32 %v1654, %v1654
      %v1679 = vmul.f32 %v1655, %v1655
      %v1680 = vmul.f32 %v1656, %v1656
      %v1681 = vmul.f32 %v1657, %v1657
      %v1682 = vmul.f32 %v1658, %v1658
      %v1683 = vmul.f32 %v1659, %v1659
      %v1684 = vmul.f32 %v1660, %v1660
      %v1685 = vmul.f32 %v1661, %v1661
      %v1686 = vmul.f32 %v1662, -25.0
      %v1687 = vmul.f32 %v1663, -25.0
      %v1688 = vmul.f32 %v1664, -25.0
      %v1689 = vmul.f32 %v1665, -25.0
      %v1690 = vmul.f32 %v1666, -25.0
      %v1691 = vmul.f32 %v1667, -25.0
      %v1692 = vmul.f32 %v1668, -25.0
      %v1693 = vmul.f32 %v1669, -25.0
      %v1694 = vmul.f32 %v1670, -25.0
      %v1695 = vmul.f32 %v1671, -25.0
      %v1696 = vmul.f32 %v1672, -25.0
      %v1697 = vmul.f32 %v1673, -25.0
      %v1698 = vmul.f32 %v1674, -25.0
      %v1699 = vmul.f32 %v1675, -25.0
      %v1700 = vmul.f32 %v1676, -25.0
      %v1701 = vmul.f32 %v1677, -25.0
      %v1702 = vmul.f32 %v1678, -25.0
      %v1703 = vmul.f32 %v1679, -25.0
      %v1704 = vmul.f32 %v1680, -25.0
      %v1705 = vmul.f32 %v1681, -25.0
      %v1706 = vmul.f32 %v1682, -25.0
      %v1707 = vmul.f32 %v1683, -25.0
      %v1708 = vmul.f32 %v1684, -25.0
      %v1709 = vmul.f32 %v1685, -25.0
      %v1710 = vmul.f32 %v1686, 1.442695
      %v1711 = vpow.pop %v1710
      %v1712 = vmul.f32 %v1687, 1.442695
      %v1713 = vpow.pop %v1712
      %v1714 = vmul.f32 %v1688, 1.442695
      %v1715 = vpow.pop %v1714
      %v1716 = vmul.f32 %v1689, 1.442695
      %v1717 = vpow.pop %v1716
      %v1718 = vmul.f32 %v1690, 1.442695
      %v1719 = vpow.pop %v1718
      %v1720 = vmul.f32 %v1691, 1.442695
      %v1721 = vpow.pop %v1720
      %v1722 = vmul.f32 %v1692, 1.442695
      %v1723 = vpow.pop %v1722
      %v1724 = vmul.f32 %v1693, 1.442695
      %v1725 = vpow.pop %v1724
      %v1726 = vmul.f32 %v1694, 1.442695
      %v1727 = vpow.pop %v1726
      %v1728 = vmul.f32 %v1695, 1.442695
      %v1729 = vpow.pop %v1728
      %v1730 = vmul.f32 %v1696, 1.442695
      %v1731 = vpow.pop %v1730
      %v1732 = vmul.f32 %v1697, 1.442695
      %v1733 = vpow.pop %v1732
      %v1734 = vmul.f32 %v1698, 1.442695
      %v1735 = vpow.pop %v1734
      %v1736 = vmul.f32 %v1699, 1.442695
      %v1737 = vpow.pop %v1736
      %v1738 = vmul.f32 %v1700, 1.442695
      %v1739 = vpow.pop %v1738
      %v1740 = vmul.f32 %v1701, 1.442695
      %v1741 = vpow.pop %v1740
      %v1742 = vmul.f32 %v1702, 1.442695
      %v1743 = vpow.pop %v1742
      %v1744 = vmul.f32 %v1703, 1.442695
      %v1745 = vpow.pop %v1744
      %v1746 = vmul.f32 %v1704, 1.442695
      %v1747 = vpow.pop %v1746
      %v1748 = vmul.f32 %v1705, 1.442695
      %v1749 = vpow.pop %v1748
      %v1750 = vmul.f32 %v1706, 1.442695
      %v1751 = vpow.pop %v1750
      %v1752 = vmul.f32 %v1707, 1.442695
      %v1753 = vpow.pop %v1752
      %v1754 = vmul.f32 %v1708, 1.442695
      %v1755 = vpow.pop %v1754
      %v1756 = vmul.f32 %v1709, 1.442695
      %v1757 = vpow.pop %v1756
      %v1758 = vpack.c.bf16 %v1713, %v1711
      %v1759 = vpack.c.bf16 %v1715, %v1715
      %v1760 = vpack.c.bf16 %v1719, %v1717
      %v1761 = vpack.c.bf16 %v1721, %v1721
      %v1762 = vpack.c.bf16 %v1725, %v1723
      %v1763 = vpack.c.bf16 %v1727, %v1727
      %v1764 = vpack.c.bf16 %v1731, %v1729
      %v1765 = vpack.c.bf16 %v1733, %v1733
      %v1766 = vpack.c.bf16 %v1737, %v1735
      %v1767 = vpack.c.bf16 %v1739, %v1739
      %v1768 = vpack.c.bf16 %v1743, %v1741
      %v1769 = vpack.c.bf16 %v1745, %v1745
      %v1770 = vpack.c.bf16 %v1749, %v1747
      %v1771 = vpack.c.bf16 %v1751, %v1751
      %v1772 = vpack.c.bf16 %v1755, %v1753
      %v1773 = vpack.c.bf16 %v1757, %v1757
      %v1775 = vcombine.high %v1526, %v1526
      %v1777 = vunpack.c.l.s4 1966171168
      %v1778 = vunpack.c.0.s8 %v1777
      %v1779 = vlaneseq
      %v1780 = vshrl.u32 %v1779, 7
      %v1781 = vsub.s32 %v1778, %v1780
      %v1782 = vrot.slane %v1526, %v1781
      %v1784 = vunpack.c.l.s4 1966171168
      %v1785 = vunpack.c.0.s8 %v1784
      %v1786 = vlaneseq
      %v1787 = vshrl.u32 %v1786, 7
      %v1788 = vsub.s32 %v1785, %v1787
      %v1789 = vrot.slane %v1775, %v1788
      %v1790 = vcombine.high %v1782, %v1782
      %v1791 = vcombine.high %v1789, %v1789
      %v1793 = vunpack.c.l.s4 1966171168
      %v1794 = vunpack.c.0.s8 %v1793
      %v1795 = vlaneseq
      %v1796 = vshrl.u32 %v1795, 7
      %v1797 = vsub.s32 %v1794, %v1796
      %v1798 = vrot.slane %v1782, %v1797
      %v1800 = vunpack.c.l.s4 1966171168
      %v1801 = vunpack.c.0.s8 %v1800
      %v1802 = vlaneseq
      %v1803 = vshrl.u32 %v1802, 7
      %v1804 = vsub.s32 %v1801, %v1803
      %v1805 = vrot.slane %v1789, %v1804
      %v1807 = vunpack.c.l.s4 1966171168
      %v1808 = vunpack.c.0.s8 %v1807
      %v1809 = vlaneseq
      %v1810 = vshrl.u32 %v1809, 7
      %v1811 = vsub.s32 %v1808, %v1810
      %v1812 = vrot.slane %v1790, %v1811
      %v1814 = vunpack.c.l.s4 1966171168
      %v1815 = vunpack.c.0.s8 %v1814
      %v1816 = vlaneseq
      %v1817 = vshrl.u32 %v1816, 7
      %v1818 = vsub.s32 %v1815, %v1817
      %v1819 = vrot.slane %v1791, %v1818
      %v1820 = vcombine.high %v1798, %v1798
      %v1821 = vcombine.high %v1805, %v1805
      %v1822 = vcombine.high %v1812, %v1812
      %v1823 = vcombine.high %v1819, %v1819
      %v1832 = vpack.c.bf16 %v1798, %v1798
      %v1833 = vpack.c.bf16 %v1812, %v1812
      %v1834 = vpack.c.bf16 %v1820, %v1820
      %v1835 = vpack.c.bf16 %v1822, %v1822
      %v1836 = vpack.c.bf16 %v1805, %v1805
      %v1837 = vpack.c.bf16 %v1819, %v1819
      %v1838 = vpack.c.bf16 %v1821, %v1821
      %v1839 = vpack.c.bf16 %v1823, %v1823
      %v1841 = vpack.i.b16 %v1832, %v1832
      %v1843 = vlaneseq
      %v1844 = vshrl.u32 %v1843, 7
      %v1845 = vsub.s32 0, %v1844
      %v1846 = vrot.slane %v1841, %v1845
      %v1848 = vpack.i.b16 %v1833, %v1833
      %v1850 = vlaneseq
      %v1851 = vshrl.u32 %v1850, 7
      %v1852 = vsub.s32 0, %v1851
      %v1853 = vrot.slane %v1848, %v1852
      %v1855 = vpack.i.b16 %v1834, %v1834
      %v1857 = vlaneseq
      %v1858 = vshrl.u32 %v1857, 7
      %v1859 = vsub.s32 0, %v1858
      %v1860 = vrot.slane %v1855, %v1859
      %v1862 = vpack.i.b16 %v1835, %v1835
      %v1864 = vlaneseq
      %v1865 = vshrl.u32 %v1864, 7
      %v1866 = vsub.s32 0, %v1865
      %v1867 = vrot.slane %v1862, %v1866
      %v1869 = vpack.i.b16 %v1836, %v1836
      %v1871 = vlaneseq
      %v1872 = vshrl.u32 %v1871, 7
      %v1873 = vsub.s32 0, %v1872
      %v1874 = vrot.slane %v1869, %v1873
      %v1876 = vpack.i.b16 %v1837, %v1837
      %v1878 = vlaneseq
      %v1879 = vshrl.u32 %v1878, 7
      %v1880 = vsub.s32 0, %v1879
      %v1881 = vrot.slane %v1876, %v1880
      %v1883 = vpack.i.b16 %v1838, %v1838
      %v1885 = vlaneseq
      %v1886 = vshrl.u32 %v1885, 7
      %v1887 = vsub.s32 0, %v1886
      %v1888 = vrot.slane %v1883, %v1887
      %v1890 = vpack.i.b16 %v1839, %v1839
      %v1892 = vlaneseq
      %v1893 = vshrl.u32 %v1892, 7
      %v1894 = vsub.s32 0, %v1893
      %v1895 = vrot.slane %v1890, %v1894
      %v1896 = vmul.bf16 %v1758, %v1846
      %v1897 = vmul.bf16 %v1759, %v1846
      %v1898 = vmul.bf16 %v1760, %v1853
      %v1899 = vmul.bf16 %v1761, %v1853
      %v1900 = vmul.bf16 %v1762, %v1860
      %v1901 = vmul.bf16 %v1763, %v1860
      %v1902 = vmul.bf16 %v1764, %v1867
      %v1903 = vmul.bf16 %v1765, %v1867
      %v1904 = vmul.bf16 %v1766, %v1874
      %v1905 = vmul.bf16 %v1767, %v1874
      %v1906 = vmul.bf16 %v1768, %v1881
      %v1907 = vmul.bf16 %v1769, %v1881
      %v1908 = vmul.bf16 %v1770, %v1888
      %v1909 = vmul.bf16 %v1771, %v1888
      %v1910 = vmul.bf16 %v1772, %v1895
      %v1911 = vmul.bf16 %v1773, %v1895
      %vm1912 = vcmask 171008
      %v1914 = vsel %vm1912, %v1287, 0
      %v1917 = vsel %vm1912, %v1896, 0
      %v1920 = vsel %vm1912, %v1897, 0
      %1922 = vmatprep.subr.bf16.mxu0 0
      %1923 = vmatpush1.bf16.xpose.msra.mxu0 %v1917
      %1924 = vmatprep.subr.bf16.mxu0 0
      %1925 = vmatpush1.bf16.xpose.msra.mxu0 %v1920
      %1926 = vmatprep.subr.bf16.mxu0 0
      %1927 = vmatpush1.bf16.xpose.msra.mxu0 0
      %1928 = vmatprep.subr.bf16.mxu0 0
      %1929 = vmatpush1.bf16.xpose.msra.mxu0 0
      %1930 = vmatprep.subr.bf16.mxu0 0
      %1931 = vmatpush1.bf16.xpose.msra.mxu0 0
      %1932 = vmatprep.subr.bf16.mxu0 0
      %1933 = vmatpush1.bf16.xpose.msra.mxu0 0
      %1934 = vmatprep.subr.bf16.mxu0 0
      %1935 = vmatpush1.bf16.xpose.msra.mxu0 0
      %1936 = vmatprep.subr.bf16.mxu0 0
      %1937 = vmatpush1.bf16.xpose.msra.mxu0 0
      %1938 = vmatprep.subr.bf16.mxu0 0
      %1939 = vmatpush1.bf16.xpose.msra.mxu0 0
      %1940 = vmatprep.subr.bf16.mxu0 0
      %1941 = vmatpush1.bf16.xpose.msra.mxu0 0
      %1942 = vmatprep.subr.bf16.mxu0 0
      %1943 = vmatpush1.bf16.xpose.msra.mxu0 0
      %1944 = vmatprep.subr.bf16.mxu0 0
      %1945 = vmatpush1.bf16.xpose.msra.mxu0 0
      %1946 = vmatprep.subr.bf16.mxu0 0
      %1947 = vmatpush1.bf16.xpose.msra.mxu0 0
      %1948 = vmatprep.subr.bf16.mxu0 0
      %1949 = vmatpush1.bf16.xpose.msra.mxu0 0
      %1950 = vmatprep.subr.bf16.mxu0 0
      %1951 = vmatpush1.bf16.xpose.msra.mxu0 0
      %1952 = vmatprep.subr.bf16.mxu0 0
      %1953 = vmatpush1.bf16.xpose.msra.mxu0 0
      %1954 = vmatprep.mubr.bf16.mxu0 0
      %1955 = vmatmul.mubr.bf16.gmra.mrb[0].mxu0 %v1914
      %v1956 = vpop.f32.mrb[0].mxu0
      %v1957 = vadd.f32 0.0, %v1956
      %v1958 = vpop.f32.mrb[0].mxu0
      %v1959 = vpop.f32.mrb[0].mxu0
      %v1960 = vpop.f32.mrb[0].mxu0
      %1961 = vdwg.mxu0
      %v1963 = vsel %vm1912, %v1288, 0
      %v1966 = vsel %vm1912, %v1898, 0
      %v1969 = vsel %vm1912, %v1899, 0
      %1971 = vmatprep.subr.bf16.mxu0 0
      %1972 = vmatpush1.bf16.xpose.msra.mxu0 %v1966
      %1973 = vmatprep.subr.bf16.mxu0 0
      %1974 = vmatpush1.bf16.xpose.msra.mxu0 %v1969
      %1975 = vmatprep.subr.bf16.mxu0 0
      %1976 = vmatpush1.bf16.xpose.msra.mxu0 0
      %1977 = vmatprep.subr.bf16.mxu0 0
      %1978 = vmatpush1.bf16.xpose.msra.mxu0 0
      %1979 = vmatprep.subr.bf16.mxu0 0
      %1980 = vmatpush1.bf16.xpose.msra.mxu0 0
      %1981 = vmatprep.subr.bf16.mxu0 0
      %1982 = vmatpush1.bf16.xpose.msra.mxu0 0
      %1983 = vmatprep.subr.bf16.mxu0 0
      %1984 = vmatpush1.bf16.xpose.msra.mxu0 0
      %1985 = vmatprep.subr.bf16.mxu0 0
      %1986 = vmatpush1.bf16.xpose.msra.mxu0 0
      %1987 = vmatprep.subr.bf16.mxu0 0
      %1988 = vmatpush1.bf16.xpose.msra.mxu0 0
      %1989 = vmatprep.subr.bf16.mxu0 0
      %1990 = vmatpush1.bf16.xpose.msra.mxu0 0
      %1991 = vmatprep.subr.bf16.mxu0 0
      %1992 = vmatpush1.bf16.xpose.msra.mxu0 0
      %1993 = vmatprep.subr.bf16.mxu0 0
      %1994 = vmatpush1.bf16.xpose.msra.mxu0 0
      %1995 = vmatprep.subr.bf16.mxu0 0
      %1996 = vmatpush1.bf16.xpose.msra.mxu0 0
      %1997 = vmatprep.subr.bf16.mxu0 0
      %1998 = vmatpush1.bf16.xpose.msra.mxu0 0
      %1999 = vmatprep.subr.bf16.mxu0 0
      %2000 = vmatpush1.bf16.xpose.msra.mxu0 0
      %2001 = vmatprep.subr.bf16.mxu0 0
      %2002 = vmatpush1.bf16.xpose.msra.mxu0 0
      %2003 = vmatprep.mubr.bf16.mxu0 0
      %2004 = vmatmul.mubr.bf16.gmra.mrb[0].mxu0 %v1963
      %v2005 = vpop.f32.mrb[0].mxu0
      %v2006 = vadd.f32 0.0, %v2005
      %v2007 = vpop.f32.mrb[0].mxu0
      %v2008 = vpop.f32.mrb[0].mxu0
      %v2009 = vpop.f32.mrb[0].mxu0
      %2010 = vdwg.mxu0
      %v2012 = vsel %vm1912, %v1289, 0
      %v2015 = vsel %vm1912, %v1900, 0
      %v2018 = vsel %vm1912, %v1901, 0
      %2020 = vmatprep.subr.bf16.mxu0 0
      %2021 = vmatpush1.bf16.xpose.msra.mxu0 %v2015
      %2022 = vmatprep.subr.bf16.mxu0 0
      %2023 = vmatpush1.bf16.xpose.msra.mxu0 %v2018
      %2024 = vmatprep.subr.bf16.mxu0 0
      %2025 = vmatpush1.bf16.xpose.msra.mxu0 0
      %2026 = vmatprep.subr.bf16.mxu0 0
      %2027 = vmatpush1.bf16.xpose.msra.mxu0 0
      %2028 = vmatprep.subr.bf16.mxu0 0
      %2029 = vmatpush1.bf16.xpose.msra.mxu0 0
      %2030 = vmatprep.subr.bf16.mxu0 0
      %2031 = vmatpush1.bf16.xpose.msra.mxu0 0
      %2032 = vmatprep.subr.bf16.mxu0 0
      %2033 = vmatpush1.bf16.xpose.msra.mxu0 0
      %2034 = vmatprep.subr.bf16.mxu0 0
      %2035 = vmatpush1.bf16.xpose.msra.mxu0 0
      %2036 = vmatprep.subr.bf16.mxu0 0
      %2037 = vmatpush1.bf16.xpose.msra.mxu0 0
      %2038 = vmatprep.subr.bf16.mxu0 0
      %2039 = vmatpush1.bf16.xpose.msra.mxu0 0
      %2040 = vmatprep.subr.bf16.mxu0 0
      %2041 = vmatpush1.bf16.xpose.msra.mxu0 0
      %2042 = vmatprep.subr.bf16.mxu0 0
      %2043 = vmatpush1.bf16.xpose.msra.mxu0 0
      %2044 = vmatprep.subr.bf16.mxu0 0
      %2045 = vmatpush1.bf16.xpose.msra.mxu0 0
      %2046 = vmatprep.subr.bf16.mxu0 0
      %2047 = vmatpush1.bf16.xpose.msra.mxu0 0
      %2048 = vmatprep.subr.bf16.mxu0 0
      %2049 = vmatpush1.bf16.xpose.msra.mxu0 0
      %2050 = vmatprep.subr.bf16.mxu0 0
      %2051 = vmatpush1.bf16.xpose.msra.mxu0 0
      %2052 = vmatprep.mubr.bf16.mxu0 0
      %2053 = vmatmul.mubr.bf16.gmra.mrb[0].mxu0 %v2012
      %v2054 = vpop.f32.mrb[0].mxu0
      %v2055 = vadd.f32 0.0, %v2054
      %v2056 = vpop.f32.mrb[0].mxu0
      %v2057 = vpop.f32.mrb[0].mxu0
      %v2058 = vpop.f32.mrb[0].mxu0
      %2059 = vdwg.mxu0
      %v2061 = vsel %vm1912, %v1290, 0
      %v2064 = vsel %vm1912, %v1902, 0
      %v2067 = vsel %vm1912, %v1903, 0
      %2069 = vmatprep.subr.bf16.mxu0 0
      %2070 = vmatpush1.bf16.xpose.msra.mxu0 %v2064
      %2071 = vmatprep.subr.bf16.mxu0 0
      %2072 = vmatpush1.bf16.xpose.msra.mxu0 %v2067
      %2073 = vmatprep.subr.bf16.mxu0 0
      %2074 = vmatpush1.bf16.xpose.msra.mxu0 0
      %2075 = vmatprep.subr.bf16.mxu0 0
      %2076 = vmatpush1.bf16.xpose.msra.mxu0 0
      %2077 = vmatprep.subr.bf16.mxu0 0
      %2078 = vmatpush1.bf16.xpose.msra.mxu0 0
      %2079 = vmatprep.subr.bf16.mxu0 0
      %2080 = vmatpush1.bf16.xpose.msra.mxu0 0
      %2081 = vmatprep.subr.bf16.mxu0 0
      %2082 = vmatpush1.bf16.xpose.msra.mxu0 0
      %2083 = vmatprep.subr.bf16.mxu0 0
      %2084 = vmatpush1.bf16.xpose.msra.mxu0 0
      %2085 = vmatprep.subr.bf16.mxu0 0
      %2086 = vmatpush1.bf16.xpose.msra.mxu0 0
      %2087 = vmatprep.subr.bf16.mxu0 0
      %2088 = vmatpush1.bf16.xpose.msra.mxu0 0
      %2089 = vmatprep.subr.bf16.mxu0 0
      %2090 = vmatpush1.bf16.xpose.msra.mxu0 0
      %2091 = vmatprep.subr.bf16.mxu0 0
      %2092 = vmatpush1.bf16.xpose.msra.mxu0 0
      %2093 = vmatprep.subr.bf16.mxu0 0
      %2094 = vmatpush1.bf16.xpose.msra.mxu0 0
      %2095 = vmatprep.subr.bf16.mxu0 0
      %2096 = vmatpush1.bf16.xpose.msra.mxu0 0
      %2097 = vmatprep.subr.bf16.mxu0 0
      %2098 = vmatpush1.bf16.xpose.msra.mxu0 0
      %2099 = vmatprep.subr.bf16.mxu0 0
      %2100 = vmatpush1.bf16.xpose.msra.mxu0 0
      %2101 = vmatprep.mubr.bf16.mxu0 0
      %2102 = vmatmul.mubr.bf16.gmra.mrb[0].mxu0 %v2061
      %v2103 = vpop.f32.mrb[0].mxu0
      %v2104 = vadd.f32 0.0, %v2103
      %v2105 = vpop.f32.mrb[0].mxu0
      %v2106 = vpop.f32.mrb[0].mxu0
      %v2107 = vpop.f32.mrb[0].mxu0
      %2108 = vdwg.mxu0
      %v2110 = vsel %vm1912, %v1291, 0
      %v2113 = vsel %vm1912, %v1904, 0
      %v2116 = vsel %vm1912, %v1905, 0
      %2118 = vmatprep.subr.bf16.mxu0 0
      %2119 = vmatpush1.bf16.xpose.msra.mxu0 %v2113
      %2120 = vmatprep.subr.bf16.mxu0 0
      %2121 = vmatpush1.bf16.xpose.msra.mxu0 %v2116
      %2122 = vmatprep.subr.bf16.mxu0 0
      %2123 = vmatpush1.bf16.xpose.msra.mxu0 0
      %2124 = vmatprep.subr.bf16.mxu0 0
      %2125 = vmatpush1.bf16.xpose.msra.mxu0 0
      %2126 = vmatprep.subr.bf16.mxu0 0
      %2127 = vmatpush1.bf16.xpose.msra.mxu0 0
      %2128 = vmatprep.subr.bf16.mxu0 0
      %2129 = vmatpush1.bf16.xpose.msra.mxu0 0
      %2130 = vmatprep.subr.bf16.mxu0 0
      %2131 = vmatpush1.bf16.xpose.msra.mxu0 0
      %2132 = vmatprep.subr.bf16.mxu0 0
      %2133 = vmatpush1.bf16.xpose.msra.mxu0 0
      %2134 = vmatprep.subr.bf16.mxu0 0
      %2135 = vmatpush1.bf16.xpose.msra.mxu0 0
      %2136 = vmatprep.subr.bf16.mxu0 0
      %2137 = vmatpush1.bf16.xpose.msra.mxu0 0
      %2138 = vmatprep.subr.bf16.mxu0 0
      %2139 = vmatpush1.bf16.xpose.msra.mxu0 0
      %2140 = vmatprep.subr.bf16.mxu0 0
      %2141 = vmatpush1.bf16.xpose.msra.mxu0 0
      %2142 = vmatprep.subr.bf16.mxu0 0
      %2143 = vmatpush1.bf16.xpose.msra.mxu0 0
      %2144 = vmatprep.subr.bf16.mxu0 0
      %2145 = vmatpush1.bf16.xpose.msra.mxu0 0
      %2146 = vmatprep.subr.bf16.mxu0 0
      %2147 = vmatpush1.bf16.xpose.msra.mxu0 0
      %2148 = vmatprep.subr.bf16.mxu0 0
      %2149 = vmatpush1.bf16.xpose.msra.mxu0 0
      %2150 = vmatprep.mubr.bf16.mxu0 0
      %2151 = vmatmul.mubr.bf16.gmra.mrb[0].mxu0 %v2110
      %v2152 = vpop.f32.mrb[0].mxu0
      %v2153 = vadd.f32 0.0, %v2152
      %v2154 = vpop.f32.mrb[0].mxu0
      %v2155 = vpop.f32.mrb[0].mxu0
      %v2156 = vpop.f32.mrb[0].mxu0
      %2157 = vdwg.mxu0
      %v2159 = vsel %vm1912, %v1292, 0
      %v2162 = vsel %vm1912, %v1906, 0
      %v2165 = vsel %vm1912, %v1907, 0
      %2167 = vmatprep.subr.bf16.mxu0 0
      %2168 = vmatpush1.bf16.xpose.msra.mxu0 %v2162
      %2169 = vmatprep.subr.bf16.mxu0 0
      %2170 = vmatpush1.bf16.xpose.msra.mxu0 %v2165
      %2171 = vmatprep.subr.bf16.mxu0 0
      %2172 = vmatpush1.bf16.xpose.msra.mxu0 0
      %2173 = vmatprep.subr.bf16.mxu0 0
      %2174 = vmatpush1.bf16.xpose.msra.mxu0 0
      %2175 = vmatprep.subr.bf16.mxu0 0
      %2176 = vmatpush1.bf16.xpose.msra.mxu0 0
      %2177 = vmatprep.subr.bf16.mxu0 0
      %2178 = vmatpush1.bf16.xpose.msra.mxu0 0
      %2179 = vmatprep.subr.bf16.mxu0 0
      %2180 = vmatpush1.bf16.xpose.msra.mxu0 0
      %2181 = vmatprep.subr.bf16.mxu0 0
      %2182 = vmatpush1.bf16.xpose.msra.mxu0 0
      %2183 = vmatprep.subr.bf16.mxu0 0
      %2184 = vmatpush1.bf16.xpose.msra.mxu0 0
      %2185 = vmatprep.subr.bf16.mxu0 0
      %2186 = vmatpush1.bf16.xpose.msra.mxu0 0
      %2187 = vmatprep.subr.bf16.mxu0 0
      %2188 = vmatpush1.bf16.xpose.msra.mxu0 0
      %2189 = vmatprep.subr.bf16.mxu0 0
      %2190 = vmatpush1.bf16.xpose.msra.mxu0 0
      %2191 = vmatprep.subr.bf16.mxu0 0
      %2192 = vmatpush1.bf16.xpose.msra.mxu0 0
      %2193 = vmatprep.subr.bf16.mxu0 0
      %2194 = vmatpush1.bf16.xpose.msra.mxu0 0
      %2195 = vmatprep.subr.bf16.mxu0 0
      %2196 = vmatpush1.bf16.xpose.msra.mxu0 0
      %2197 = vmatprep.subr.bf16.mxu0 0
      %2198 = vmatpush1.bf16.xpose.msra.mxu0 0
      %2199 = vmatprep.mubr.bf16.mxu0 0
      %2200 = vmatmul.mubr.bf16.gmra.mrb[0].mxu0 %v2159
      %v2201 = vpop.f32.mrb[0].mxu0
      %v2202 = vadd.f32 0.0, %v2201
      %v2203 = vpop.f32.mrb[0].mxu0
      %v2204 = vpop.f32.mrb[0].mxu0
      %v2205 = vpop.f32.mrb[0].mxu0
      %2206 = vdwg.mxu0
      %v2208 = vsel %vm1912, %v1293, 0
      %v2211 = vsel %vm1912, %v1908, 0
      %v2214 = vsel %vm1912, %v1909, 0
      %2216 = vmatprep.subr.bf16.mxu0 0
      %2217 = vmatpush1.bf16.xpose.msra.mxu0 %v2211
      %2218 = vmatprep.subr.bf16.mxu0 0
      %2219 = vmatpush1.bf16.xpose.msra.mxu0 %v2214
      %2220 = vmatprep.subr.bf16.mxu0 0
      %2221 = vmatpush1.bf16.xpose.msra.mxu0 0
      %2222 = vmatprep.subr.bf16.mxu0 0
      %2223 = vmatpush1.bf16.xpose.msra.mxu0 0
      %2224 = vmatprep.subr.bf16.mxu0 0
      %2225 = vmatpush1.bf16.xpose.msra.mxu0 0
      %2226 = vmatprep.subr.bf16.mxu0 0
      %2227 = vmatpush1.bf16.xpose.msra.mxu0 0
      %2228 = vmatprep.subr.bf16.mxu0 0
      %2229 = vmatpush1.bf16.xpose.msra.mxu0 0
      %2230 = vmatprep.subr.bf16.mxu0 0
      %2231 = vmatpush1.bf16.xpose.msra.mxu0 0
      %2232 = vmatprep.subr.bf16.mxu0 0
      %2233 = vmatpush1.bf16.xpose.msra.mxu0 0
      %2234 = vmatprep.subr.bf16.mxu0 0
      %2235 = vmatpush1.bf16.xpose.msra.mxu0 0
      %2236 = vmatprep.subr.bf16.mxu0 0
      %2237 = vmatpush1.bf16.xpose.msra.mxu0 0
      %2238 = vmatprep.subr.bf16.mxu0 0
      %2239 = vmatpush1.bf16.xpose.msra.mxu0 0
      %2240 = vmatprep.subr.bf16.mxu0 0
      %2241 = vmatpush1.bf16.xpose.msra.mxu0 0
      %2242 = vmatprep.subr.bf16.mxu0 0
      %2243 = vmatpush1.bf16.xpose.msra.mxu0 0
      %2244 = vmatprep.subr.bf16.mxu0 0
      %2245 = vmatpush1.bf16.xpose.msra.mxu0 0
      %2246 = vmatprep.subr.bf16.mxu0 0
      %2247 = vmatpush1.bf16.xpose.msra.mxu0 0
      %2248 = vmatprep.mubr.bf16.mxu0 0
      %2249 = vmatmul.mubr.bf16.gmra.mrb[0].mxu0 %v2208
      %v2250 = vpop.f32.mrb[0].mxu0
      %v2251 = vadd.f32 0.0, %v2250
      %v2252 = vpop.f32.mrb[0].mxu0
      %v2253 = vpop.f32.mrb[0].mxu0
      %v2254 = vpop.f32.mrb[0].mxu0
      %2255 = vdwg.mxu0
      %v2257 = vsel %vm1912, %v1294, 0
      %v2260 = vsel %vm1912, %v1910, 0
      %v2263 = vsel %vm1912, %v1911, 0
      %2265 = vmatprep.subr.bf16.mxu0 0
      %2266 = vmatpush1.bf16.xpose.msra.mxu0 %v2260
      %2267 = vmatprep.subr.bf16.mxu0 0
      %2268 = vmatpush1.bf16.xpose.msra.mxu0 %v2263
      %2269 = vmatprep.subr.bf16.mxu0 0
      %2270 = vmatpush1.bf16.xpose.msra.mxu0 0
      %2271 = vmatprep.subr.bf16.mxu0 0
      %2272 = vmatpush1.bf16.xpose.msra.mxu0 0
      %2273 = vmatprep.subr.bf16.mxu0 0
      %2274 = vmatpush1.bf16.xpose.msra.mxu0 0
      %2275 = vmatprep.subr.bf16.mxu0 0
      %2276 = vmatpush1.bf16.xpose.msra.mxu0 0
      %2277 = vmatprep.subr.bf16.mxu0 0
      %2278 = vmatpush1.bf16.xpose.msra.mxu0 0
      %2279 = vmatprep.subr.bf16.mxu0 0
      %2280 = vmatpush1.bf16.xpose.msra.mxu0 0
      %2281 = vmatprep.subr.bf16.mxu0 0
      %2282 = vmatpush1.bf16.xpose.msra.mxu0 0
      %2283 = vmatprep.subr.bf16.mxu0 0
      %2284 = vmatpush1.bf16.xpose.msra.mxu0 0
      %2285 = vmatprep.subr.bf16.mxu0 0
      %2286 = vmatpush1.bf16.xpose.msra.mxu0 0
      %2287 = vmatprep.subr.bf16.mxu0 0
      %2288 = vmatpush1.bf16.xpose.msra.mxu0 0
      %2289 = vmatprep.subr.bf16.mxu0 0
      %2290 = vmatpush1.bf16.xpose.msra.mxu0 0
      %2291 = vmatprep.subr.bf16.mxu0 0
      %2292 = vmatpush1.bf16.xpose.msra.mxu0 0
      %2293 = vmatprep.subr.bf16.mxu0 0
      %2294 = vmatpush1.bf16.xpose.msra.mxu0 0
      %2295 = vmatprep.subr.bf16.mxu0 0
      %2296 = vmatpush1.bf16.xpose.msra.mxu0 0
      %2297 = vmatprep.mubr.bf16.mxu0 0
      %2298 = vmatmul.mubr.bf16.gmra.mrb[0].mxu0 %v2257
      %v2299 = vpop.f32.mrb[0].mxu0
      %v2300 = vadd.f32 0.0, %v2299
      %v2301 = vpop.f32.mrb[0].mxu0
      %v2302 = vpop.f32.mrb[0].mxu0
      %v2303 = vpop.f32.mrb[0].mxu0
      %2304 = vdwg.mxu0
      %v2305 = vadd.f32 %v1527, %v1957
      %v2306 = vadd.f32 %v1528, %v2006
      %v2307 = vadd.f32 %v1529, %v2055
      %v2308 = vadd.f32 %v1530, %v2104
      %v2309 = vadd.f32 %v1531, %v2153
      %v2310 = vadd.f32 %v1532, %v2202
      %v2311 = vadd.f32 %v1533, %v2251
      %v2312 = vadd.f32 %v1534, %v2300
      %vm2313 = vcmask 167936
      %2314 = vst.msk [vmem:[#allocation2] sm:$0x1f] %vm2313, %v2305
      %2315 = vst.msk [vmem:[#allocation2 + $0x8] sm:$0x1f] %vm2313, %v2306
      %2316 = vst.msk [vmem:[#allocation2 + $0x10] sm:$0x1f] %vm2313, %v2307
      %2317 = vst.msk [vmem:[#allocation2 + $0x18] sm:$0x1f] %vm2313, %v2308
      %2318 = vst.msk [vmem:[#allocation2 + $0x20] sm:$0x1f] %vm2313, %v2309
      %2319 = vst.msk [vmem:[#allocation2 + $0x28] sm:$0x1f] %vm2313, %v2310
      %2320 = vst.msk [vmem:[#allocation2 + $0x30] sm:$0x1f] %vm2313, %v2311
      %2321 = vst.msk [vmem:[#allocation2 + $0x38] sm:$0x1f] %vm2313, %v2312
      // Predicated region
      $region49: #{tpu_custom_call.1} parent=43 // pred_check
        %p2322 = pneg %p587
      $region50: #{tpu_custom_call.1} parent=43 // pred_check_branch
        %2324 = sbr.rel (%p2322) target = $region52
      $region51: #{tpu_custom_call.1} parent=43 // pred_region
        %v2325 = vld [vmem:[#allocation2] sm:$0x1f]
        %v2326 = vld [vmem:[#allocation2 + $0x8] sm:$0x1f]
        %v2327 = vld [vmem:[#allocation2 + $0x10] sm:$0x1f]
        %v2328 = vld [vmem:[#allocation2 + $0x18] sm:$0x1f]
        %v2329 = vld [vmem:[#allocation2 + $0x20] sm:$0x1f]
        %v2330 = vld [vmem:[#allocation2 + $0x28] sm:$0x1f]
        %v2331 = vld [vmem:[#allocation2 + $0x30] sm:$0x1f]
        %v2332 = vld [vmem:[#allocation2 + $0x38] sm:$0x1f]
        %2333 = vst.msk [vmem:[%s577] sm:$0x1f] %vm2313, %v2325
        %2334 = vst.msk [vmem:[%s577 + $0x8] sm:$0x1f] %vm2313, %v2326
        %2335 = vst.msk [vmem:[%s577 + $0x10] sm:$0x1f] %vm2313, %v2327
        %2336 = vst.msk [vmem:[%s577 + $0x18] sm:$0x1f] %vm2313, %v2328
        %2337 = vst.msk [vmem:[%s577 + $0x20] sm:$0x1f] %vm2313, %v2329
        %2338 = vst.msk [vmem:[%s577 + $0x28] sm:$0x1f] %vm2313, %v2330
        %2339 = vst.msk [vmem:[%s577 + $0x30] sm:$0x1f] %vm2313, %v2331
        %2340 = vst.msk [vmem:[%s577 + $0x38] sm:$0x1f] %vm2313, %v2332
      $region52: #{tpu_custom_call.1} parent=43 // pred_fallthru
        _
      %s2341 = smul.u32 8, %s26
      %p2342 = scmp.lt.s32.totalorder %s25, 1
      %s2343 = scalar_select %p2342, %s25, 1
      %p2344 = scmp.lt.s32.totalorder %s2341, 7
      %s2345 = scalar_select %p2344, %s2341, 7
      %s2346 = smul.addr %s2343, 8
      %s2347 = sadd.s32 %s2345, %s2346
      %s2348 = smul.addr %s2347, 8
      %s2349 = scalar_lea.vmem %s6, %s2348
      %s2350 = smul.u32 8, %s26
      %p2351 = scmp.lt.s32.totalorder %s25, 1
      %s2352 = scalar_select %p2351, %s25, 1
      %p2353 = scmp.lt.s32.totalorder %s2350, 7
      %s2354 = scalar_select %p2353, %s2350, 7
      %s2355 = smul.addr %s2352, 8
      %s2356 = sadd.s32 %s2354, %s2355
      %s2357 = smul.addr %s2356, 8
      %s2358 = scalar_lea.vmem %s7, %s2357
      %p2359 = scmp.lt.s32.totalorder %s25, 1
      %s2360 = scalar_select %p2359, %s25, 1
      %p2361 = scmp.lt.s32.totalorder %s26, 0
      %s2362 = scalar_select %p2361, %s26, 0
      %s2363 = sadd.s32 %s2362, %s2360
      %s2364 = smul.addr %s2363, 8
      %s2365 = scalar_lea.vmem %s8, %s2364
      // Predicated region
      $region53: #{tpu_custom_call.1} parent=43 // pred_check
        %p2366 = pneg %p235
      $region54: #{tpu_custom_call.1} parent=43 // pred_check_branch
        %2368 = sbr.rel (%p2366) target = $region56
      $region55: #{tpu_custom_call.1} parent=43 // pred_region
        %s2369 = smul.u32 8, %s26
      $region56: #{tpu_custom_call.1} parent=43 // pred_fallthru
        _
      // Predicated region
      $region57: #{tpu_custom_call.1} parent=43 // pred_check
        %p2370 = pneg %p263
      $region58: #{tpu_custom_call.1} parent=43 // pred_check_branch
        %2372 = sbr.rel (%p2370) target = $region60
      $region59: #{tpu_custom_call.1} parent=43 // pred_region
        %s2373 = smul.u32 8, %s26
      $region60: #{tpu_custom_call.1} parent=43 // pred_fallthru
        _
      // Predicated region
      $region61: #{tpu_custom_call.1} parent=43 // pred_check
        %p2374 = pneg %p291
      $region62: #{tpu_custom_call.1} parent=43 // pred_check_branch
        %2376 = sbr.rel (%p2374) target = $region64
      $region63: #{tpu_custom_call.1} parent=43 // pred_region
        _
      $region64: #{tpu_custom_call.1} parent=43 // pred_fallthru
        _
    $region44: #{tpu_custom_call.1} parent=5 // pred_fallthru
      _
    %p2377 = scmp.le.s32.totalorder 2, %s15
    // Predicated region
    $region65: #{tpu_custom_call.1} parent=5 // pred_check
      %p2378 = pneg %p2377
    $region66: #{tpu_custom_call.1} parent=5 // pred_check_branch
      %2380 = sbr.rel (%p2378) target = $region68
    $region67: #{tpu_custom_call.1} parent=5 // pred_region
      %s2381 = ssub.s32 %s15, 2
      // Predicated region
      $region69: #{tpu_custom_call.1} parent=67 // pred_check
        %p2382 = pneg %p241
      $region70: #{tpu_custom_call.1} parent=67 // pred_check_branch
        %2384 = sbr.rel (%p2382) target = $region72
      $region71: #{tpu_custom_call.1} parent=67 // pred_region
        %s2385 = smul.u32 8, %s29
        %p2386 = scmp.lt.s32.totalorder %s28, 1
        %s2387 = scalar_select %p2386, %s28, 1
        %p2388 = scmp.lt.s32.totalorder %s2385, 7
        %s2389 = scalar_select %p2388, %s2385, 7
        %s2390 = smul.addr %s2387, 8
        %s2391 = sadd.s32 %s2389, %s2390
        %s2392 = smul.addr %s2391, 8
        %s2393 = scalar_lea.vmem %s6, %s2392
      $region72: #{tpu_custom_call.1} parent=67 // pred_fallthru
        _
      // Predicated region
      $region73: #{tpu_custom_call.1} parent=67 // pred_check
        %p2394 = pneg %p269
      $region74: #{tpu_custom_call.1} parent=67 // pred_check_branch
        %2396 = sbr.rel (%p2394) target = $region76
      $region75: #{tpu_custom_call.1} parent=67 // pred_region
        %s2397 = smul.u32 8, %s29
        %p2398 = scmp.lt.s32.totalorder %s28, 1
        %s2399 = scalar_select %p2398, %s28, 1
        %p2400 = scmp.lt.s32.totalorder %s2397, 7
        %s2401 = scalar_select %p2400, %s2397, 7
        %s2402 = smul.addr %s2399, 8
        %s2403 = sadd.s32 %s2401, %s2402
        %s2404 = smul.addr %s2403, 8
        %s2405 = scalar_lea.vmem %s7, %s2404
      $region76: #{tpu_custom_call.1} parent=67 // pred_fallthru
        _
      // Predicated region
      $region77: #{tpu_custom_call.1} parent=67 // pred_check
        %p2406 = pneg %p297
      $region78: #{tpu_custom_call.1} parent=67 // pred_check_branch
        %2408 = sbr.rel (%p2406) target = $region80
      $region79: #{tpu_custom_call.1} parent=67 // pred_region
        %p2409 = scmp.lt.s32.totalorder %s28, 1
        %s2410 = scalar_select %p2409, %s28, 1
        %p2411 = scmp.lt.s32.totalorder %s29, 0
        %s2412 = scalar_select %p2411, %s29, 0
        %s2413 = sadd.s32 %s2412, %s2410
        %s2414 = smul.addr %s2413, 8
        %s2415 = scalar_lea.vmem %s8, %s2414
      $region80: #{tpu_custom_call.1} parent=67 // pred_fallthru
        _
    $region68: #{tpu_custom_call.1} parent=5 // pred_fallthru
      _
  $region6: #{tpu_custom_call.1} parent=0 // loop_footer
    %s19 = sadd.s32 1, %s15
  $region7: #{tpu_custom_call.1} parent=0 // loop_footer_branch
    %14 = sbr.rel target = $region3
  $region8: #{tpu_custom_call.1} parent=0 // loop_exit
    _

</llo_original>
